<compile_context>
chip_gen: v7x
topology: tpu7x:2x2x1
jax: 0.10.0
libtpu: 0.0.40
codegen_flags: <defaults>
</compile_context>

<pallas_src>
import math
from functools import partial

import jax
import jax.numpy as jnp
from jax import lax
from jax.experimental import pallas as pl
from jax.experimental.pallas import tpu as pltpu


# ----------------------------- Pallas kernel -----------------------------

def _downsample_conv_kernel(ee_ref, eed_ref, eo_ref, eod_ref, oe_ref, oo_ref,
                            w_ref, b_ref, o_ref, *, th, wout, cin, cout_pad):
    """One (batch, row-tile) step of Conv2d(k=3, stride=2, pad=1) on NHWC phases.

    Phase refs (bf16):
      ee/eed/oe : (1, th, wout + 1, cin)  even-column phases (need col offsets 0 and 1)
      eo/eod/oo : (1, th, wout,     cin)  odd-column phases  (col offset 0 only)
    w_ref : (9, cin, cout_pad) bf16, taps (ki, kj) row-major.
    b_ref : (1, cout_pad) f32.
    o_ref : (1, th, wout, cout_pad) f32.
    """
    def tap(ref, col_off):
        x = ref[0]                                   # (th, w, cin) bf16
        x = x[:, col_off:col_off + wout, :]          # (th, wout, cin)
        return x.reshape(th * wout, cin)

    # (phase ref, column offset) per tap, (ki, kj) row-major -> matches w_ref ordering.
    taps = ((ee_ref, 0), (eo_ref, 0), (ee_ref, 1),      # ki = 0
            (oe_ref, 0), (oo_ref, 0), (oe_ref, 1),      # ki = 1
            (eed_ref, 0), (eod_ref, 0), (eed_ref, 1))   # ki = 2

    acc = jnp.zeros((th * wout, cout_pad), jnp.float32)
    for k, (ref, off) in enumerate(taps):
        acc = acc + jnp.dot(tap(ref, off), w_ref[k],
                            preferred_element_type=jnp.float32)   # bf16 x bf16 -> f32 (MXU)
    acc = acc + b_ref[...]                                        # fused bias epilogue (f32)
    o_ref[...] = acc.reshape(1, th, wout, cout_pad).astype(o_ref.dtype)


# ----------------------------- wrapper -----------------------------

def _choose_tile_rows(hout, wout, cin, cout_pad, budget_bytes=8 * 1024 * 1024):
    """Largest divisor of hout whose double-buffered working set fits the VMEM budget."""
    best = 1
    for th in range(1, hout + 1):
        if hout % th:
            continue
        phase_bytes = th * (3 * (wout + 1) + 3 * wout) * cin * 2    # 6 bf16 phase blocks
        out_bytes = th * wout * cout_pad * 4
        fixed = 9 * cin * cout_pad * 2 + cout_pad * 4               # weights + bias
        acc_bytes = th * wout * cout_pad * 4
        total = 2 * (phase_bytes + out_bytes + fixed) + acc_bytes   # x2 double buffering
        if total <= budget_bytes:
            best = th
    return best


def downsample(x, w, b):
    """PyTorch Downsample.forward: Conv2d(dim, dim, 3, stride=2, padding=1).

    x : (B, C, H, W) float32 (NCHW), w : (Cout, Cin, 3, 3) (OIHW), b : (Cout,)
    returns (B, Cout, ceil(H/2), ceil(W/2)) float32
    """
    B, C, H, W = x.shape
    cout, cin, kh, kw = w.shape
    assert (cin, kh, kw) == (C, 3, 3)

    hout, wout = -(-H // 2), -(-W // 2)
    h_even, w_even = 2 * hout, 2 * wout
    cpad = -(-cout // 128) * 128                      # lane-dense output channels

    # NHWC + zero pad (conv padding=1; padding up to even H/W is equivalent for odd sizes).
    xh = jnp.transpose(x, (0, 2, 3, 1)).astype(jnp.bfloat16)   # bf16 MXU operands
    xp = jnp.pad(xh, ((0, 0), (1, 1 + h_even - H), (1, 1 + w_even - W), (0, 0)))

    # Parity phase split: tap (ki, kj) reads padded pixel (2r+ki, 2c+kj); after the split every
    # tap is a contiguous block of one of these tensors (no strided/overlapping kernel reads).
    ee = xp[:, 0::2, 0::2, :]                          # (B, hout+1, wout+1, C)
    eo = xp[:, 0::2, 1::2, :]
    oe = xp[:, 1::2, 0::2, :]
    oo = xp[:, 1::2, 1::2, :]
    p_ee, p_eed = ee[:, :hout], ee[:, 1:hout + 1]               # even rows r, r+1
    p_eo, p_eod = eo[:, :hout, :wout], eo[:, 1:hout + 1, :wout]
    p_oe = oe[:, :hout]                                         # odd rows r
    p_oo = oo[:, :hout, :wout]

    # Weights: per-tap (Cin, Cout) matrices (transposed from OIHW), padded to lane-aligned Cout.
    taps = [(ki, kj) for ki in range(3) for kj in range(3)]
    wt = jnp.stack([w[:, :, ki, kj].T for ki, kj in taps])       # (9, Cin, Cout)
    wt = jnp.pad(wt, ((0, 0), (0, 0), (0, cpad - cout))).astype(jnp.bfloat16)
    bt = jnp.pad(b.astype(jnp.float32), (0, cpad - cout)).reshape(1, cpad)

    th = _choose_tile_rows(hout, wout, C, cpad)
    grid = (B, hout // th)
    idx4 = lambda bi, ti: (bi, ti, 0, 0)
    wide = pl.BlockSpec((1, th, wout + 1, C), idx4)
    narrow = pl.BlockSpec((1, th, wout, C), idx4)

    y = pl.pallas_call(
        partial(_downsample_conv_kernel, th=th, wout=wout, cin=C, cout_pad=cpad),
        grid=grid,
        in_specs=[wide, wide, narrow, narrow, wide, narrow,
                  pl.BlockSpec((9, C, cpad), lambda bi, ti: (0, 0, 0)),
                  pl.BlockSpec((1, cpad), lambda bi, ti: (0, 0))],
        out_specs=pl.BlockSpec((1, th, wout, cpad), idx4),
        out_shape=jax.ShapeDtypeStruct((B, hout, wout, cpad), jnp.float32),
        compiler_params=pltpu.CompilerParams(
            dimension_semantics=("parallel", "parallel"),
            vmem_limit_bytes=32 * 1024 * 1024),
    )(p_ee, p_eed, p_eo, p_eod, p_oe, p_oo, wt, bt)

    return jnp.transpose(y[..., :cout], (0, 3, 1, 2))            # back to NCHW


# ----------------------------- main -----------------------------

if __name__ == "__main__":
    key = jax.random.PRNGKey(0)
    kx, kw, kb = jax.random.split(key, 3)

    # Downsample(dim=64) applied to a (2, 64, 16, 16) feature map.
    B, DIM, H, W = 2, 64, 16, 16
    x = jax.random.normal(kx, (B, DIM, H, W), jnp.float32)
    w = jax.random.normal(kw, (DIM, DIM, 3, 3), jnp.float32) / math.sqrt(9 * DIM)
    b = jax.random.normal(kb, (DIM,), jnp.float32) * 0.01

    out = jax.block_until_ready(jax.jit(downsample)(x, w, b))
    assert out.shape == (B, DIM, H // 2, W // 2), out.shape
    assert bool(jnp.all(jnp.isfinite(out)))

    # Parity check vs XLA conv on the same bf16-rounded operands (f32 accumulation both sides).
    xr = x.astype(jnp.bfloat16).astype(jnp.float32)
    wr = w.astype(jnp.bfloat16).astype(jnp.float32)
    ref = lax.conv_general_dilated(
        xr, wr, window_strides=(2, 2), padding=((1, 1), (1, 1)),
        dimension_numbers=("NCHW", "OIHW", "NCHW"),
        precision=lax.Precision.HIGHEST) + b[None, :, None, None]
    err = float(jnp.max(jnp.abs(out - ref)))
    assert err < 1e-2, f"max abs diff vs reference conv: {err}"

    print("KERNEL_OK")
</pallas_src>

<mosaic_0001>
module attributes {stable_mosaic.version = 11 : i64} {
  func.func @_downsample_conv_kernel(%arg0: i32, %arg1: i32, %arg2: memref<1x8x9x64xbf16, #tpu.memory_space<vmem>>, %arg3: memref<1x8x9x64xbf16, #tpu.memory_space<vmem>>, %arg4: memref<1x8x8x64xbf16, #tpu.memory_space<vmem>>, %arg5: memref<1x8x8x64xbf16, #tpu.memory_space<vmem>>, %arg6: memref<1x8x9x64xbf16, #tpu.memory_space<vmem>>, %arg7: memref<1x8x8x64xbf16, #tpu.memory_space<vmem>>, %arg8: memref<9x64x128xbf16, #tpu.memory_space<vmem>>, %arg9: memref<1x128xf32, #tpu.memory_space<vmem>>, %arg10: memref<1x8x8x128xf32, #tpu.memory_space<vmem>>) attributes {dimension_semantics = [#tpu.dimension_semantics<parallel>, #tpu.dimension_semantics<parallel>], iteration_bounds = array<i64: 2, 1>, scalar_prefetch = 0 : i64, scratch_operands = 0 : i64, tpu.core_type = #tpu.core_type<tc>, window_params = [{transform_indices = @transform_0, window_bounds = array<i64: 1, 8, 9, 64>}, {transform_indices = @transform_1, window_bounds = array<i64: 1, 8, 9, 64>}, {transform_indices = @transform_2, window_bounds = array<i64: 1, 8, 8, 64>}, {transform_indices = @transform_3, window_bounds = array<i64: 1, 8, 8, 64>}, {transform_indices = @transform_4, window_bounds = array<i64: 1, 8, 9, 64>}, {transform_indices = @transform_5, window_bounds = array<i64: 1, 8, 8, 64>}, {pipeline_mode = #tpu.pipeline_mode<synchronous>, transform_indices = @transform_6, window_bounds = array<i64: 9, 64, 128>}, {pipeline_mode = #tpu.pipeline_mode<synchronous>, transform_indices = @transform_7, window_bounds = array<i64: 1, 128>}, {transform_indices = @transform_8, window_bounds = array<i64: 1, 8, 8, 128>}]} {
    %cst = arith.constant 0.000000e+00 : f32
    %0 = vector.broadcast %cst : f32 to vector<64x128xf32>
    %c0 = arith.constant 0 : index
    %c0_0 = arith.constant 0 : index
    %c0_1 = arith.constant 0 : index
    %c0_2 = arith.constant 0 : index
    %1 = vector.load %arg2[%c0, %c0_0, %c0_1, %c0_2] : memref<1x8x9x64xbf16, #tpu.memory_space<vmem>>, vector<1x8x9x64xbf16>
    %2 = vector.shape_cast %1 : vector<1x8x9x64xbf16> to vector<8x9x64xbf16>
    %3 = vector.extract_strided_slice %2 {offsets = [0, 0, 0], sizes = [8, 8, 64], strides = [1, 1, 1]} : vector<8x9x64xbf16> to vector<8x8x64xbf16>
    %4 = vector.shape_cast %3 : vector<8x8x64xbf16> to vector<64x64xbf16>
    %c0_3 = arith.constant 0 : index
    %c0_4 = arith.constant 0 : index
    %c0_5 = arith.constant 0 : index
    %5 = vector.load %arg8[%c0_3, %c0_4, %c0_5] : memref<9x64x128xbf16, #tpu.memory_space<vmem>>, vector<1x64x128xbf16>
    %6 = vector.shape_cast %5 : vector<1x64x128xbf16> to vector<64x128xbf16>
    %cst_6 = arith.constant dense<0.000000e+00> : vector<64x128xf32>
    %7 = tpu.matmul %4, %6, %cst_6 {dimension_numbers = #tpu.dot_dimension_numbers<[1], [0], [0], [1], [0, 0, 1, 1], [], []>} : vector<64x64xbf16>, vector<64x128xbf16>, vector<64x128xf32> -> vector<64x128xf32>
    %8 = arith.addf %0, %7 : vector<64x128xf32>
    %c0_7 = arith.constant 0 : index
    %c0_8 = arith.constant 0 : index
    %c0_9 = arith.constant 0 : index
    %c0_10 = arith.constant 0 : index
    %9 = vector.load %arg4[%c0_7, %c0_8, %c0_9, %c0_10] : memref<1x8x8x64xbf16, #tpu.memory_space<vmem>>, vector<1x8x8x64xbf16>
    %10 = vector.shape_cast %9 : vector<1x8x8x64xbf16> to vector<8x8x64xbf16>
    %11 = vector.shape_cast %10 : vector<8x8x64xbf16> to vector<64x64xbf16>
    %c1 = arith.constant 1 : index
    %c0_11 = arith.constant 0 : index
    %c0_12 = arith.constant 0 : index
    %12 = vector.load %arg8[%c1, %c0_11, %c0_12] : memref<9x64x128xbf16, #tpu.memory_space<vmem>>, vector<1x64x128xbf16>
    %13 = vector.shape_cast %12 : vector<1x64x128xbf16> to vector<64x128xbf16>
    %cst_13 = arith.constant dense<0.000000e+00> : vector<64x128xf32>
    %14 = tpu.matmul %11, %13, %cst_13 {dimension_numbers = #tpu.dot_dimension_numbers<[1], [0], [0], [1], [0, 0, 1, 1], [], []>} : vector<64x64xbf16>, vector<64x128xbf16>, vector<64x128xf32> -> vector<64x128xf32>
    %15 = arith.addf %8, %14 : vector<64x128xf32>
    %c0_14 = arith.constant 0 : index
    %c0_15 = arith.constant 0 : index
    %c0_16 = arith.constant 0 : index
    %c0_17 = arith.constant 0 : index
    %16 = vector.load %arg2[%c0_14, %c0_15, %c0_16, %c0_17] : memref<1x8x9x64xbf16, #tpu.memory_space<vmem>>, vector<1x8x9x64xbf16>
    %17 = vector.shape_cast %16 : vector<1x8x9x64xbf16> to vector<8x9x64xbf16>
    %18 = vector.extract_strided_slice %17 {offsets = [0, 1, 0], sizes = [8, 8, 64], strides = [1, 1, 1]} : vector<8x9x64xbf16> to vector<8x8x64xbf16>
    %19 = vector.shape_cast %18 : vector<8x8x64xbf16> to vector<64x64xbf16>
    %c2 = arith.constant 2 : index
    %c0_18 = arith.constant 0 : index
    %c0_19 = arith.constant 0 : index
    %20 = vector.load %arg8[%c2, %c0_18, %c0_19] : memref<9x64x128xbf16, #tpu.memory_space<vmem>>, vector<1x64x128xbf16>
    %21 = vector.shape_cast %20 : vector<1x64x128xbf16> to vector<64x128xbf16>
    %cst_20 = arith.constant dense<0.000000e+00> : vector<64x128xf32>
    %22 = tpu.matmul %19, %21, %cst_20 {dimension_numbers = #tpu.dot_dimension_numbers<[1], [0], [0], [1], [0, 0, 1, 1], [], []>} : vector<64x64xbf16>, vector<64x128xbf16>, vector<64x128xf32> -> vector<64x128xf32>
    %23 = arith.addf %15, %22 : vector<64x128xf32>
    %c0_21 = arith.constant 0 : index
    %c0_22 = arith.constant 0 : index
    %c0_23 = arith.constant 0 : index
    %c0_24 = arith.constant 0 : index
    %24 = vector.load %arg6[%c0_21, %c0_22, %c0_23, %c0_24] : memref<1x8x9x64xbf16, #tpu.memory_space<vmem>>, vector<1x8x9x64xbf16>
    %25 = vector.shape_cast %24 : vector<1x8x9x64xbf16> to vector<8x9x64xbf16>
    %26 = vector.extract_strided_slice %25 {offsets = [0, 0, 0], sizes = [8, 8, 64], strides = [1, 1, 1]} : vector<8x9x64xbf16> to vector<8x8x64xbf16>
    %27 = vector.shape_cast %26 : vector<8x8x64xbf16> to vector<64x64xbf16>
    %c3 = arith.constant 3 : index
    %c0_25 = arith.constant 0 : index
    %c0_26 = arith.constant 0 : index
    %28 = vector.load %arg8[%c3, %c0_25, %c0_26] : memref<9x64x128xbf16, #tpu.memory_space<vmem>>, vector<1x64x128xbf16>
    %29 = vector.shape_cast %28 : vector<1x64x128xbf16> to vector<64x128xbf16>
    %cst_27 = arith.constant dense<0.000000e+00> : vector<64x128xf32>
    %30 = tpu.matmul %27, %29, %cst_27 {dimension_numbers = #tpu.dot_dimension_numbers<[1], [0], [0], [1], [0, 0, 1, 1], [], []>} : vector<64x64xbf16>, vector<64x128xbf16>, vector<64x128xf32> -> vector<64x128xf32>
    %31 = arith.addf %23, %30 : vector<64x128xf32>
    %c0_28 = arith.constant 0 : index
    %c0_29 = arith.constant 0 : index
    %c0_30 = arith.constant 0 : index
    %c0_31 = arith.constant 0 : index
    %32 = vector.load %arg7[%c0_28, %c0_29, %c0_30, %c0_31] : memref<1x8x8x64xbf16, #tpu.memory_space<vmem>>, vector<1x8x8x64xbf16>
    %33 = vector.shape_cast %32 : vector<1x8x8x64xbf16> to vector<8x8x64xbf16>
    %34 = vector.shape_cast %33 : vector<8x8x64xbf16> to vector<64x64xbf16>
    %c4 = arith.constant 4 : index
    %c0_32 = arith.constant 0 : index
    %c0_33 = arith.constant 0 : index
    %35 = vector.load %arg8[%c4, %c0_32, %c0_33] : memref<9x64x128xbf16, #tpu.memory_space<vmem>>, vector<1x64x128xbf16>
    %36 = vector.shape_cast %35 : vector<1x64x128xbf16> to vector<64x128xbf16>
    %cst_34 = arith.constant dense<0.000000e+00> : vector<64x128xf32>
    %37 = tpu.matmul %34, %36, %cst_34 {dimension_numbers = #tpu.dot_dimension_numbers<[1], [0], [0], [1], [0, 0, 1, 1], [], []>} : vector<64x64xbf16>, vector<64x128xbf16>, vector<64x128xf32> -> vector<64x128xf32>
    %38 = arith.addf %31, %37 : vector<64x128xf32>
    %c0_35 = arith.constant 0 : index
    %c0_36 = arith.constant 0 : index
    %c0_37 = arith.constant 0 : index
    %c0_38 = arith.constant 0 : index
    %39 = vector.load %arg6[%c0_35, %c0_36, %c0_37, %c0_38] : memref<1x8x9x64xbf16, #tpu.memory_space<vmem>>, vector<1x8x9x64xbf16>
    %40 = vector.shape_cast %39 : vector<1x8x9x64xbf16> to vector<8x9x64xbf16>
    %41 = vector.extract_strided_slice %40 {offsets = [0, 1, 0], sizes = [8, 8, 64], strides = [1, 1, 1]} : vector<8x9x64xbf16> to vector<8x8x64xbf16>
    %42 = vector.shape_cast %41 : vector<8x8x64xbf16> to vector<64x64xbf16>
    %c5 = arith.constant 5 : index
    %c0_39 = arith.constant 0 : index
    %c0_40 = arith.constant 0 : index
    %43 = vector.load %arg8[%c5, %c0_39, %c0_40] : memref<9x64x128xbf16, #tpu.memory_space<vmem>>, vector<1x64x128xbf16>
    %44 = vector.shape_cast %43 : vector<1x64x128xbf16> to vector<64x128xbf16>
    %cst_41 = arith.constant dense<0.000000e+00> : vector<64x128xf32>
    %45 = tpu.matmul %42, %44, %cst_41 {dimension_numbers = #tpu.dot_dimension_numbers<[1], [0], [0], [1], [0, 0, 1, 1], [], []>} : vector<64x64xbf16>, vector<64x128xbf16>, vector<64x128xf32> -> vector<64x128xf32>
    %46 = arith.addf %38, %45 : vector<64x128xf32>
    %c0_42 = arith.constant 0 : index
    %c0_43 = arith.constant 0 : index
    %c0_44 = arith.constant 0 : index
    %c0_45 = arith.constant 0 : index
    %47 = vector.load %arg3[%c0_42, %c0_43, %c0_44, %c0_45] : memref<1x8x9x64xbf16, #tpu.memory_space<vmem>>, vector<1x8x9x64xbf16>
    %48 = vector.shape_cast %47 : vector<1x8x9x64xbf16> to vector<8x9x64xbf16>
    %49 = vector.extract_strided_slice %48 {offsets = [0, 0, 0], sizes = [8, 8, 64], strides = [1, 1, 1]} : vector<8x9x64xbf16> to vector<8x8x64xbf16>
    %50 = vector.shape_cast %49 : vector<8x8x64xbf16> to vector<64x64xbf16>
    %c6 = arith.constant 6 : index
    %c0_46 = arith.constant 0 : index
    %c0_47 = arith.constant 0 : index
    %51 = vector.load %arg8[%c6, %c0_46, %c0_47] : memref<9x64x128xbf16, #tpu.memory_space<vmem>>, vector<1x64x128xbf16>
    %52 = vector.shape_cast %51 : vector<1x64x128xbf16> to vector<64x128xbf16>
    %cst_48 = arith.constant dense<0.000000e+00> : vector<64x128xf32>
    %53 = tpu.matmul %50, %52, %cst_48 {dimension_numbers = #tpu.dot_dimension_numbers<[1], [0], [0], [1], [0, 0, 1, 1], [], []>} : vector<64x64xbf16>, vector<64x128xbf16>, vector<64x128xf32> -> vector<64x128xf32>
    %54 = arith.addf %46, %53 : vector<64x128xf32>
    %c0_49 = arith.constant 0 : index
    %c0_50 = arith.constant 0 : index
    %c0_51 = arith.constant 0 : index
    %c0_52 = arith.constant 0 : index
    %55 = vector.load %arg5[%c0_49, %c0_50, %c0_51, %c0_52] : memref<1x8x8x64xbf16, #tpu.memory_space<vmem>>, vector<1x8x8x64xbf16>
    %56 = vector.shape_cast %55 : vector<1x8x8x64xbf16> to vector<8x8x64xbf16>
    %57 = vector.shape_cast %56 : vector<8x8x64xbf16> to vector<64x64xbf16>
    %c7 = arith.constant 7 : index
    %c0_53 = arith.constant 0 : index
    %c0_54 = arith.constant 0 : index
    %58 = vector.load %arg8[%c7, %c0_53, %c0_54] : memref<9x64x128xbf16, #tpu.memory_space<vmem>>, vector<1x64x128xbf16>
    %59 = vector.shape_cast %58 : vector<1x64x128xbf16> to vector<64x128xbf16>
    %cst_55 = arith.constant dense<0.000000e+00> : vector<64x128xf32>
    %60 = tpu.matmul %57, %59, %cst_55 {dimension_numbers = #tpu.dot_dimension_numbers<[1], [0], [0], [1], [0, 0, 1, 1], [], []>} : vector<64x64xbf16>, vector<64x128xbf16>, vector<64x128xf32> -> vector<64x128xf32>
    %61 = arith.addf %54, %60 : vector<64x128xf32>
    %c0_56 = arith.constant 0 : index
    %c0_57 = arith.constant 0 : index
    %c0_58 = arith.constant 0 : index
    %c0_59 = arith.constant 0 : index
    %62 = vector.load %arg3[%c0_56, %c0_57, %c0_58, %c0_59] : memref<1x8x9x64xbf16, #tpu.memory_space<vmem>>, vector<1x8x9x64xbf16>
    %63 = vector.shape_cast %62 : vector<1x8x9x64xbf16> to vector<8x9x64xbf16>
    %64 = vector.extract_strided_slice %63 {offsets = [0, 1, 0], sizes = [8, 8, 64], strides = [1, 1, 1]} : vector<8x9x64xbf16> to vector<8x8x64xbf16>
    %65 = vector.shape_cast %64 : vector<8x8x64xbf16> to vector<64x64xbf16>
    %c8 = arith.constant 8 : index
    %c0_60 = arith.constant 0 : index
    %c0_61 = arith.constant 0 : index
    %66 = vector.load %arg8[%c8, %c0_60, %c0_61] : memref<9x64x128xbf16, #tpu.memory_space<vmem>>, vector<1x64x128xbf16>
    %67 = vector.shape_cast %66 : vector<1x64x128xbf16> to vector<64x128xbf16>
    %cst_62 = arith.constant dense<0.000000e+00> : vector<64x128xf32>
    %68 = tpu.matmul %65, %67, %cst_62 {dimension_numbers = #tpu.dot_dimension_numbers<[1], [0], [0], [1], [0, 0, 1, 1], [], []>} : vector<64x64xbf16>, vector<64x128xbf16>, vector<64x128xf32> -> vector<64x128xf32>
    %69 = arith.addf %61, %68 : vector<64x128xf32>
    %c0_63 = arith.constant 0 : index
    %c0_64 = arith.constant 0 : index
    %70 = vector.load %arg9[%c0_63, %c0_64] : memref<1x128xf32, #tpu.memory_space<vmem>>, vector<1x128xf32>
    %71 = vector.broadcast %70 : vector<1x128xf32> to vector<64x128xf32>
    %72 = arith.addf %69, %71 : vector<64x128xf32>
    %73 = vector.shape_cast %72 : vector<64x128xf32> to vector<1x8x8x128xf32>
    %c0_65 = arith.constant 0 : index
    %c0_66 = arith.constant 0 : index
    %c0_67 = arith.constant 0 : index
    %c0_68 = arith.constant 0 : index
    %74 = vector.load %arg10[%c0_65, %c0_66, %c0_67, %c0_68] : memref<1x8x8x128xf32, #tpu.memory_space<vmem>>, vector<1x8x8x128xf32>
    tpu.vector_store %arg10[%c0_65, %c0_66, %c0_67, %c0_68], %73 {strides = array<i32>} : memref<1x8x8x128xf32, #tpu.memory_space<vmem>>, vector<1x8x8x128xf32>,
    return
  }
  func.func @transform_0(%arg0: i32, %arg1: i32) -> (i32, i32, i32, i32) {
    %c0_i32 = arith.constant 0 : i32
    %c0_i32_0 = arith.constant 0 : i32
    %c0_i32_1 = arith.constant 0 : i32
    return %arg0, %arg1, %c0_i32, %c0_i32_0 : i32, i32, i32, i32
  }
  func.func @transform_1(%arg0: i32, %arg1: i32) -> (i32, i32, i32, i32) {
    %c0_i32 = arith.constant 0 : i32
    %c0_i32_0 = arith.constant 0 : i32
    %c0_i32_1 = arith.constant 0 : i32
    return %arg0, %arg1, %c0_i32, %c0_i32_0 : i32, i32, i32, i32
  }
  func.func @transform_2(%arg0: i32, %arg1: i32) -> (i32, i32, i32, i32) {
    %c0_i32 = arith.constant 0 : i32
    %c0_i32_0 = arith.constant 0 : i32
    %c0_i32_1 = arith.constant 0 : i32
    return %arg0, %arg1, %c0_i32, %c0_i32_0 : i32, i32, i32, i32
  }
  func.func @transform_3(%arg0: i32, %arg1: i32) -> (i32, i32, i32, i32) {
    %c0_i32 = arith.constant 0 : i32
    %c0_i32_0 = arith.constant 0 : i32
    %c0_i32_1 = arith.constant 0 : i32
    return %arg0, %arg1, %c0_i32, %c0_i32_0 : i32, i32, i32, i32
  }
  func.func @transform_4(%arg0: i32, %arg1: i32) -> (i32, i32, i32, i32) {
    %c0_i32 = arith.constant 0 : i32
    %c0_i32_0 = arith.constant 0 : i32
    %c0_i32_1 = arith.constant 0 : i32
    return %arg0, %arg1, %c0_i32, %c0_i32_0 : i32, i32, i32, i32
  }
  func.func @transform_5(%arg0: i32, %arg1: i32) -> (i32, i32, i32, i32) {
    %c0_i32 = arith.constant 0 : i32
    %c0_i32_0 = arith.constant 0 : i32
    %c0_i32_1 = arith.constant 0 : i32
    return %arg0, %arg1, %c0_i32, %c0_i32_0 : i32, i32, i32, i32
  }
  func.func @transform_6(%arg0: i32, %arg1: i32) -> (i32, i32, i32) {
    %c0_i32 = arith.constant 0 : i32
    %c0_i32_0 = arith.constant 0 : i32
    %c0_i32_1 = arith.constant 0 : i32
    %c0_i32_2 = arith.constant 0 : i32
    return %c0_i32, %c0_i32_0, %c0_i32_1 : i32, i32, i32
  }
  func.func @transform_7(%arg0: i32, %arg1: i32) -> (i32, i32) {
    %c0_i32 = arith.constant 0 : i32
    %c0_i32_0 = arith.constant 0 : i32
    %c0_i32_1 = arith.constant 0 : i32
    return %c0_i32, %c0_i32_0 : i32, i32
  }
  func.func @transform_8(%arg0: i32, %arg1: i32) -> (i32, i32, i32, i32) {
    %c0_i32 = arith.constant 0 : i32
    %c0_i32_0 = arith.constant 0 : i32
    %c0_i32_1 = arith.constant 0 : i32
    return %arg0, %arg1, %c0_i32, %c0_i32_0 : i32, i32, i32, i32
  }
}

</mosaic_0001>

<llo_original>
// kernel: downsample.1
$region0: #{downsample.1}
  #allocation0 [shape = 'u32[]', space=smem, size = 0x4, offset = 0x4, fixed_abs, tag = 'smem constant byte address 0x4 - core index']
  #allocation1 [shape = 'u32[144,128]{1,0:T(1,128)}', space=vmem, size = 0x12000, scoped, tag = 'internal scratch']
  %s0 = inlined_call_operand.vmem [shape: bf16[2,8,9,64], index: 0, kind: input, shape index: {}]
  %s1 = inlined_call_operand.vmem [shape: bf16[2,8,9,64], index: 1, kind: input, shape index: {}]
  %s2 = inlined_call_operand.vmem [shape: bf16[2,8,8,64], index: 2, kind: input, shape index: {}]
  %s3 = inlined_call_operand.vmem [shape: bf16[2,8,8,64], index: 3, kind: input, shape index: {}]
  %s4 = inlined_call_operand.vmem [shape: bf16[2,8,9,64], index: 4, kind: input, shape index: {}]
  %s5 = inlined_call_operand.vmem [shape: bf16[2,8,8,64], index: 5, kind: input, shape index: {}]
  %s6 = inlined_call_operand.vmem [shape: bf16[9,64,128], index: 6, kind: input, shape index: {}]
  %s7 = inlined_call_operand.vmem [shape: f32[1,128], index: 7, kind: input, shape index: {}]
  %s8 = inlined_call_operand.vmem [shape: f32[2,8,8,128], index: 8, kind: output, shape index: {}]
  %s9 = sld [smem:[#allocation0]]
  $region65: #{downsample.1} parent=0
    _
  %s11 = ssub.s32 1, %s9
  %s12 = scalar_select 0, %s11, %s9
  loop: start=0, step=1, limit=4
  $region2: #{downsample.1} parent=0 // loop_pre_header
    _
  $region3: #{downsample.1} parent=0 // loop_header
    %s14 = sphi 0, %s18
    %p15 = scmp.ge.s32.totalorder %s14, 4
    %s21 = sphi 0, %s33
    %s22 = sphi 0, %s29
    %s23 = sphi 0, %s21
    %s24 = sphi 0, %s22
    %s25 = sphi 0, %s23
    %s26 = sphi 0, %s24
    %s38 = sphi 0, %s40
    %s41 = sphi 0, %s38
    %s42 = sphi 0, %s41
    %s58 = sphi 0, %s42
    %s66 = sphi 0, %s68
    %s69 = sphi 0, %s66
    %s70 = sphi 0, %s69
    %s86 = sphi 0, %s70
    %s94 = sphi 0, %s96
    %s97 = sphi 0, %s94
    %s98 = sphi 0, %s97
    %s114 = sphi 0, %s98
    %s122 = sphi 0, %s124
    %s125 = sphi 0, %s122
    %s126 = sphi 0, %s125
    %s142 = sphi 0, %s126
    %s150 = sphi 0, %s152
    %s153 = sphi 0, %s150
    %s154 = sphi 0, %s153
    %s170 = sphi 0, %s154
    %s178 = sphi 0, %s180
    %s181 = sphi 0, %s178
    %s182 = sphi 0, %s181
    %s198 = sphi 0, %s182
    %s202 = sphi 0, %s202
    %s204 = sphi 0, %s202
    %s205 = sphi 0, %s204
    %s219 = sphi 0, %s205
    %s223 = sphi 0, %s223
    %s225 = sphi 0, %s223
    %s226 = sphi 0, %s225
    %s240 = sphi 0, %s226
    %s248 = sphi 0, %s250
    %s251 = sphi 0, %s248
    %s252 = sphi 0, %s251
    %s268 = sphi 0, %s252
  $region4: #{downsample.1} parent=0 // loop_header_branch
    %17 = sbr.rel (%p15) target = $region8
  $region5: #{downsample.1} parent=0 // loop_body
    %s19 = ssub.s32 %s14, 1
    %s20 = ssub.s32 %s14, 2
    %s27 = sadd.s32 1, %s22
    %p28 = scmp.ge.s32.totalorder %s27, 1
    %s29 = scalar_select %p28, 0, %s27
    %s30 = sadd.s32 1, %s21
    %s31 = scalar_select %p28, %s30, %s21
    %p32 = scmp.ge.s32.totalorder %s31, 2
    %s33 = scalar_select %p32, 0, %s31
    %s34 = ssub.s32 %s21, %s33
    %s35 = ssub.s32 %s22, %s29
    %s36 = sor.u32 %s34, %s35
    %p37 = scmp.eq.s32.totalorder %s36, 0
    %s39 = sadd.s32 %s38, 1
    %s40 = scalar_select %p37, %s38, %s39
    %p43 = pneg %p37
    %p44 = scmp.eq.s32.totalorder %s14, 1
    %p45 = por %p43, %p44
    %p46 = scmp.ne.s32.totalorder %s38, %s41
    %p47 = scmp.eq.s32.totalorder %s14, 0
    %p48 = por %p46, %p47
    %p49 = scmp.ne.s32.totalorder %s38, %s41
    %p50 = scmp.eq.s32.totalorder %s19, 1
    %p51 = por %p49, %p50
    %p52 = scmp.ne.s32.totalorder %s41, %s42
    %p53 = scmp.eq.s32.totalorder %s19, 0
    %p54 = por %p52, %p53
    %p55 = scmp.ne.s32.totalorder %s41, %s42
    %p56 = scmp.eq.s32.totalorder %s20, 1
    %p57 = por %p55, %p56
    %p59 = scmp.ne.s32.totalorder %s42, %s58
    %p60 = scmp.eq.s32.totalorder %s20, 0
    %p61 = por %p59, %p60
    %s62 = ssub.s32 %s21, %s33
    %s63 = ssub.s32 %s22, %s29
    %s64 = sor.u32 %s62, %s63
    %p65 = scmp.eq.s32.totalorder %s64, 0
    %s67 = sadd.s32 %s66, 1
    %s68 = scalar_select %p65, %s66, %s67
    %p71 = pneg %p65
    %p72 = scmp.eq.s32.totalorder %s14, 1
    %p73 = por %p71, %p72
    %p74 = scmp.ne.s32.totalorder %s66, %s69
    %p75 = scmp.eq.s32.totalorder %s14, 0
    %p76 = por %p74, %p75
    %p77 = scmp.ne.s32.totalorder %s66, %s69
    %p78 = scmp.eq.s32.totalorder %s19, 1
    %p79 = por %p77, %p78
    %p80 = scmp.ne.s32.totalorder %s69, %s70
    %p81 = scmp.eq.s32.totalorder %s19, 0
    %p82 = por %p80, %p81
    %p83 = scmp.ne.s32.totalorder %s69, %s70
    %p84 = scmp.eq.s32.totalorder %s20, 1
    %p85 = por %p83, %p84
    %p87 = scmp.ne.s32.totalorder %s70, %s86
    %p88 = scmp.eq.s32.totalorder %s20, 0
    %p89 = por %p87, %p88
    %s90 = ssub.s32 %s21, %s33
    %s91 = ssub.s32 %s22, %s29
    %s92 = sor.u32 %s90, %s91
    %p93 = scmp.eq.s32.totalorder %s92, 0
    %s95 = sadd.s32 %s94, 1
    %s96 = scalar_select %p93, %s94, %s95
    %p99 = pneg %p93
    %p100 = scmp.eq.s32.totalorder %s14, 1
    %p101 = por %p99, %p100
    %p102 = scmp.ne.s32.totalorder %s94, %s97
    %p103 = scmp.eq.s32.totalorder %s14, 0
    %p104 = por %p102, %p103
    %p105 = scmp.ne.s32.totalorder %s94, %s97
    %p106 = scmp.eq.s32.totalorder %s19, 1
    %p107 = por %p105, %p106
    %p108 = scmp.ne.s32.totalorder %s97, %s98
    %p109 = scmp.eq.s32.totalorder %s19, 0
    %p110 = por %p108, %p109
    %p111 = scmp.ne.s32.totalorder %s97, %s98
    %p112 = scmp.eq.s32.totalorder %s20, 1
    %p113 = por %p111, %p112
    %p115 = scmp.ne.s32.totalorder %s98, %s114
    %p116 = scmp.eq.s32.totalorder %s20, 0
    %p117 = por %p115, %p116
    %s118 = ssub.s32 %s21, %s33
    %s119 = ssub.s32 %s22, %s29
    %s120 = sor.u32 %s118, %s119
    %p121 = scmp.eq.s32.totalorder %s120, 0
    %s123 = sadd.s32 %s122, 1
    %s124 = scalar_select %p121, %s122, %s123
    %p127 = pneg %p121
    %p128 = scmp.eq.s32.totalorder %s14, 1
    %p129 = por %p127, %p128
    %p130 = scmp.ne.s32.totalorder %s122, %s125
    %p131 = scmp.eq.s32.totalorder %s14, 0
    %p132 = por %p130, %p131
    %p133 = scmp.ne.s32.totalorder %s122, %s125
    %p134 = scmp.eq.s32.totalorder %s19, 1
    %p135 = por %p133, %p134
    %p136 = scmp.ne.s32.totalorder %s125, %s126
    %p137 = scmp.eq.s32.totalorder %s19, 0
    %p138 = por %p136, %p137
    %p139 = scmp.ne.s32.totalorder %s125, %s126
    %p140 = scmp.eq.s32.totalorder %s20, 1
    %p141 = por %p139, %p140
    %p143 = scmp.ne.s32.totalorder %s126, %s142
    %p144 = scmp.eq.s32.totalorder %s20, 0
    %p145 = por %p143, %p144
    %s146 = ssub.s32 %s21, %s33
    %s147 = ssub.s32 %s22, %s29
    %s148 = sor.u32 %s146, %s147
    %p149 = scmp.eq.s32.totalorder %s148, 0
    %s151 = sadd.s32 %s150, 1
    %s152 = scalar_select %p149, %s150, %s151
    %p155 = pneg %p149
    %p156 = scmp.eq.s32.totalorder %s14, 1
    %p157 = por %p155, %p156
    %p158 = scmp.ne.s32.totalorder %s150, %s153
    %p159 = scmp.eq.s32.totalorder %s14, 0
    %p160 = por %p158, %p159
    %p161 = scmp.ne.s32.totalorder %s150, %s153
    %p162 = scmp.eq.s32.totalorder %s19, 1
    %p163 = por %p161, %p162
    %p164 = scmp.ne.s32.totalorder %s153, %s154
    %p165 = scmp.eq.s32.totalorder %s19, 0
    %p166 = por %p164, %p165
    %p167 = scmp.ne.s32.totalorder %s153, %s154
    %p168 = scmp.eq.s32.totalorder %s20, 1
    %p169 = por %p167, %p168
    %p171 = scmp.ne.s32.totalorder %s154, %s170
    %p172 = scmp.eq.s32.totalorder %s20, 0
    %p173 = por %p171, %p172
    %s174 = ssub.s32 %s21, %s33
    %s175 = ssub.s32 %s22, %s29
    %s176 = sor.u32 %s174, %s175
    %p177 = scmp.eq.s32.totalorder %s176, 0
    %s179 = sadd.s32 %s178, 1
    %s180 = scalar_select %p177, %s178, %s179
    %p183 = pneg %p177
    %p184 = scmp.eq.s32.totalorder %s14, 1
    %p185 = por %p183, %p184
    %p186 = scmp.ne.s32.totalorder %s178, %s181
    %p187 = scmp.eq.s32.totalorder %s14, 0
    %p188 = por %p186, %p187
    %p189 = scmp.ne.s32.totalorder %s178, %s181
    %p190 = scmp.eq.s32.totalorder %s19, 1
    %p191 = por %p189, %p190
    %p192 = scmp.ne.s32.totalorder %s181, %s182
    %p193 = scmp.eq.s32.totalorder %s19, 0
    %p194 = por %p192, %p193
    %p195 = scmp.ne.s32.totalorder %s181, %s182
    %p196 = scmp.eq.s32.totalorder %s20, 1
    %p197 = por %p195, %p196
    %p199 = scmp.ne.s32.totalorder %s182, %s198
    %p200 = scmp.eq.s32.totalorder %s20, 0
    %p201 = por %p199, %p200
    %s203 = sadd.s32 %s202, 1
    %p206 = scmp.eq.s32.totalorder %s14, 1
    %p207 = scmp.ne.s32.totalorder %s202, %s204
    %p208 = scmp.eq.s32.totalorder %s14, 0
    %p209 = por %p207, %p208
    %p210 = scmp.ne.s32.totalorder %s202, %s204
    %p211 = scmp.eq.s32.totalorder %s19, 1
    %p212 = por %p210, %p211
    %p213 = scmp.ne.s32.totalorder %s204, %s205
    %p214 = scmp.eq.s32.totalorder %s19, 0
    %p215 = por %p213, %p214
    %p216 = scmp.ne.s32.totalorder %s204, %s205
    %p217 = scmp.eq.s32.totalorder %s20, 1
    %p218 = por %p216, %p217
    %p220 = scmp.ne.s32.totalorder %s205, %s219
    %p221 = scmp.eq.s32.totalorder %s20, 0
    %p222 = por %p220, %p221
    %s224 = sadd.s32 %s223, 1
    %p227 = scmp.eq.s32.totalorder %s14, 1
    %p228 = scmp.ne.s32.totalorder %s223, %s225
    %p229 = scmp.eq.s32.totalorder %s14, 0
    %p230 = por %p228, %p229
    %p231 = scmp.ne.s32.totalorder %s223, %s225
    %p232 = scmp.eq.s32.totalorder %s19, 1
    %p233 = por %p231, %p232
    %p234 = scmp.ne.s32.totalorder %s225, %s226
    %p235 = scmp.eq.s32.totalorder %s19, 0
    %p236 = por %p234, %p235
    %p237 = scmp.ne.s32.totalorder %s225, %s226
    %p238 = scmp.eq.s32.totalorder %s20, 1
    %p239 = por %p237, %p238
    %p241 = scmp.ne.s32.totalorder %s226, %s240
    %p242 = scmp.eq.s32.totalorder %s20, 0
    %p243 = por %p241, %p242
    %s244 = ssub.s32 %s21, %s33
    %s245 = ssub.s32 %s22, %s29
    %s246 = sor.u32 %s244, %s245
    %p247 = scmp.eq.s32.totalorder %s246, 0
    %s249 = sadd.s32 %s248, 1
    %s250 = scalar_select %p247, %s248, %s249
    %p253 = pneg %p247
    %p254 = scmp.eq.s32.totalorder %s14, 1
    %p255 = por %p253, %p254
    %p256 = scmp.ne.s32.totalorder %s248, %s251
    %p257 = scmp.eq.s32.totalorder %s14, 0
    %p258 = por %p256, %p257
    %p259 = scmp.ne.s32.totalorder %s248, %s251
    %p260 = scmp.eq.s32.totalorder %s19, 1
    %p261 = por %p259, %p260
    %p262 = scmp.ne.s32.totalorder %s251, %s252
    %p263 = scmp.eq.s32.totalorder %s19, 0
    %p264 = por %p262, %p263
    %p265 = scmp.ne.s32.totalorder %s251, %s252
    %p266 = scmp.eq.s32.totalorder %s20, 1
    %p267 = por %p265, %p266
    %p269 = scmp.ne.s32.totalorder %s252, %s268
    %p270 = scmp.eq.s32.totalorder %s20, 0
    %p271 = por %p269, %p270
    %p272 = scmp.le.s32.totalorder 1, %s14
    %p273 = scmp.lt.s32.totalorder %s14, 3
    %p274 = pnand %p272, %p273
    %p275 = pneg %p274
    // Predicated region
    $region9: #{downsample.1} parent=5 // pred_check
      _
    $region10: #{downsample.1} parent=5 // pred_check_branch
      %277 = sbr.rel (%p274) target = $region12
    $region11: #{downsample.1} parent=5 // pred_region
      %s278 = ssub.s32 %s14, 1
      // Predicated region
      $region13: #{downsample.1} parent=11 // pred_check
        %p279 = pneg %p215
      $region14: #{downsample.1} parent=11 // pred_check_branch
        %281 = sbr.rel (%p279) target = $region16
      $region15: #{downsample.1} parent=11 // pred_region
        _
      $region16: #{downsample.1} parent=11 // pred_fallthru
        _
      // Predicated region
      $region17: #{downsample.1} parent=11 // pred_check
        %p282 = pneg %p236
      $region18: #{downsample.1} parent=11 // pred_check_branch
        %284 = sbr.rel (%p282) target = $region20
      $region19: #{downsample.1} parent=11 // pred_region
        _
      $region20: #{downsample.1} parent=11 // pred_fallthru
        _
    $region12: #{downsample.1} parent=5 // pred_fallthru
      _
    %p285 = scmp.lt.s32.totalorder %s14, 2
    // Predicated region
    $region21: #{downsample.1} parent=5 // pred_check
      %p286 = pneg %p285
    $region22: #{downsample.1} parent=5 // pred_check_branch
      %288 = sbr.rel (%p286) target = $region24
    $region23: #{downsample.1} parent=5 // pred_region
      // Predicated region
      $region25: #{downsample.1} parent=23 // pred_check
        %p289 = pneg %p48
      $region26: #{downsample.1} parent=23 // pred_check_branch
        %291 = sbr.rel (%p289) target = $region28
      $region27: #{downsample.1} parent=23 // pred_region
        %s292 = smul.u32 8, %s22
        %p293 = scmp.lt.s32.totalorder %s21, 1
        %s294 = scalar_select %p293, %s21, 1
        %p295 = scmp.lt.s32.totalorder %s292, 7
        %s296 = scalar_select %p295, %s292, 7
        %s297 = smul.addr %s296, 2
        %s298 = smul.addr %s294, 16
        %s299 = sadd.s32 %s297, %s298
        %s300 = smul.addr %s299, 4
        %s301 = scalar_lea.vmem %s0, %s300
        %s302 = smul.u32 8, %s22
      $region28: #{downsample.1} parent=23 // pred_fallthru
        _
      // Predicated region
      $region29: #{downsample.1} parent=23 // pred_check
        %p303 = pneg %p76
      $region30: #{downsample.1} parent=23 // pred_check_branch
        %305 = sbr.rel (%p303) target = $region32
      $region31: #{downsample.1} parent=23 // pred_region
        %s306 = smul.u32 8, %s22
        %p307 = scmp.lt.s32.totalorder %s21, 1
        %s308 = scalar_select %p307, %s21, 1
        %p309 = scmp.lt.s32.totalorder %s306, 7
        %s310 = scalar_select %p309, %s306, 7
        %s311 = smul.addr %s310, 2
        %s312 = smul.addr %s308, 16
        %s313 = sadd.s32 %s311, %s312
        %s314 = smul.addr %s313, 4
        %s315 = scalar_lea.vmem %s1, %s314
        %s316 = smul.u32 8, %s22
      $region32: #{downsample.1} parent=23 // pred_fallthru
        _
      // Predicated region
      $region33: #{downsample.1} parent=23 // pred_check
        %p317 = pneg %p104
      $region34: #{downsample.1} parent=23 // pred_check_branch
        %319 = sbr.rel (%p317) target = $region36
      $region35: #{downsample.1} parent=23 // pred_region
        %s320 = smul.u32 8, %s22
        %p321 = scmp.lt.s32.totalorder %s21, 1
        %s322 = scalar_select %p321, %s21, 1
        %p323 = scmp.lt.s32.totalorder %s320, 7
        %s324 = scalar_select %p323, %s320, 7
        %s325 = smul.addr %s322, 8
        %s326 = sadd.s32 %s324, %s325
        %s327 = smul.addr %s326, 4
        %s328 = scalar_lea.vmem %s2, %s327
        %s329 = smul.u32 8, %s22
      $region36: #{downsample.1} parent=23 // pred_fallthru
        _
      // Predicated region
      $region37: #{downsample.1} parent=23 // pred_check
        %p330 = pneg %p132
      $region38: #{downsample.1} parent=23 // pred_check_branch
        %332 = sbr.rel (%p330) target = $region40
      $region39: #{downsample.1} parent=23 // pred_region
        %s333 = smul.u32 8, %s22
        %p334 = scmp.lt.s32.totalorder %s21, 1
        %s335 = scalar_select %p334, %s21, 1
        %p336 = scmp.lt.s32.totalorder %s333, 7
        %s337 = scalar_select %p336, %s333, 7
        %s338 = smul.addr %s335, 8
        %s339 = sadd.s32 %s337, %s338
        %s340 = smul.addr %s339, 4
        %s341 = scalar_lea.vmem %s3, %s340
        %s342 = smul.u32 8, %s22
      $region40: #{downsample.1} parent=23 // pred_fallthru
        _
      // Predicated region
      $region41: #{downsample.1} parent=23 // pred_check
        %p343 = pneg %p160
      $region42: #{downsample.1} parent=23 // pred_check_branch
        %345 = sbr.rel (%p343) target = $region44
      $region43: #{downsample.1} parent=23 // pred_region
        %s346 = smul.u32 8, %s22
        %p347 = scmp.lt.s32.totalorder %s21, 1
        %s348 = scalar_select %p347, %s21, 1
        %p349 = scmp.lt.s32.totalorder %s346, 7
        %s350 = scalar_select %p349, %s346, 7
        %s351 = smul.addr %s350, 2
        %s352 = smul.addr %s348, 16
        %s353 = sadd.s32 %s351, %s352
        %s354 = smul.addr %s353, 4
        %s355 = scalar_lea.vmem %s4, %s354
        %s356 = smul.u32 8, %s22
      $region44: #{downsample.1} parent=23 // pred_fallthru
        _
      // Predicated region
      $region45: #{downsample.1} parent=23 // pred_check
        %p357 = pneg %p188
      $region46: #{downsample.1} parent=23 // pred_check_branch
        %359 = sbr.rel (%p357) target = $region48
      $region47: #{downsample.1} parent=23 // pred_region
        %s360 = smul.u32 8, %s22
        %p361 = scmp.lt.s32.totalorder %s21, 1
        %s362 = scalar_select %p361, %s21, 1
        %p363 = scmp.lt.s32.totalorder %s360, 7
        %s364 = scalar_select %p363, %s360, 7
        %s365 = smul.addr %s362, 8
        %s366 = sadd.s32 %s364, %s365
        %s367 = smul.addr %s366, 4
        %s368 = scalar_lea.vmem %s5, %s367
        %s369 = smul.u32 8, %s22
      $region48: #{downsample.1} parent=23 // pred_fallthru
        _
    $region24: #{downsample.1} parent=5 // pred_fallthru
      _
    %p370 = scmp.le.s32.totalorder 1, %s14
    %p371 = scmp.lt.s32.totalorder %s14, 3
    %p372 = pnand %p370, %p371
    %p373 = pneg %p372
    // Predicated region
    $region49: #{downsample.1} parent=5 // pred_check
      _
    $region50: #{downsample.1} parent=5 // pred_check_branch
      %375 = sbr.rel (%p372) target = $region52
    $region51: #{downsample.1} parent=5 // pred_region
      %s376 = ssub.s32 %s14, 1
      %s377 = smul.u32 8, %s24
      %p378 = scmp.lt.s32.totalorder %s23, 1
      %s379 = scalar_select %p378, %s23, 1
      %p380 = scmp.lt.s32.totalorder %s377, 7
      %s381 = scalar_select %p380, %s377, 7
      %s382 = smul.addr %s381, 2
      %s383 = smul.addr %s379, 16
      %s384 = sadd.s32 %s382, %s383
      %s385 = smul.addr %s384, 4
      %s386 = scalar_lea.vmem %s0, %s385
      %p387 = pneg %p54
      %p388 = pneg %p51
      %s389 = smul.u32 8, %s24
      %p390 = scmp.lt.s32.totalorder %s23, 1
      %s391 = scalar_select %p390, %s23, 1
      %p392 = scmp.lt.s32.totalorder %s389, 7
      %s393 = scalar_select %p392, %s389, 7
      %s394 = smul.addr %s393, 2
      %s395 = smul.addr %s391, 16
      %s396 = sadd.s32 %s394, %s395
      %s397 = smul.addr %s396, 4
      %s398 = scalar_lea.vmem %s1, %s397
      %p399 = pneg %p82
      %p400 = pneg %p79
      %s401 = smul.u32 8, %s24
      %p402 = scmp.lt.s32.totalorder %s23, 1
      %s403 = scalar_select %p402, %s23, 1
      %p404 = scmp.lt.s32.totalorder %s401, 7
      %s405 = scalar_select %p404, %s401, 7
      %s406 = smul.addr %s403, 8
      %s407 = sadd.s32 %s405, %s406
      %s408 = smul.addr %s407, 4
      %s409 = scalar_lea.vmem %s2, %s408
      %p410 = pneg %p110
      %p411 = pneg %p107
      %s412 = smul.u32 8, %s24
      %p413 = scmp.lt.s32.totalorder %s23, 1
      %s414 = scalar_select %p413, %s23, 1
      %p415 = scmp.lt.s32.totalorder %s412, 7
      %s416 = scalar_select %p415, %s412, 7
      %s417 = smul.addr %s414, 8
      %s418 = sadd.s32 %s416, %s417
      %s419 = smul.addr %s418, 4
      %s420 = scalar_lea.vmem %s3, %s419
      %p421 = pneg %p138
      %p422 = pneg %p135
      %s423 = smul.u32 8, %s24
      %p424 = scmp.lt.s32.totalorder %s23, 1
      %s425 = scalar_select %p424, %s23, 1
      %p426 = scmp.lt.s32.totalorder %s423, 7
      %s427 = scalar_select %p426, %s423, 7
      %s428 = smul.addr %s427, 2
      %s429 = smul.addr %s425, 16
      %s430 = sadd.s32 %s428, %s429
      %s431 = smul.addr %s430, 4
      %s432 = scalar_lea.vmem %s4, %s431
      %p433 = pneg %p166
      %p434 = pneg %p163
      %s435 = smul.u32 8, %s24
      %p436 = scmp.lt.s32.totalorder %s23, 1
      %s437 = scalar_select %p436, %s23, 1
      %p438 = scmp.lt.s32.totalorder %s435, 7
      %s439 = scalar_select %p438, %s435, 7
      %s440 = smul.addr %s437, 8
      %s441 = sadd.s32 %s439, %s440
      %s442 = smul.addr %s441, 4
      %s443 = scalar_lea.vmem %s5, %s442
      %p444 = pneg %p194
      %p445 = pneg %p191
      %p446 = pneg %p215
      %p447 = pneg %p212
      %p448 = pneg %p236
      %p449 = pneg %p233
      %p450 = pneg %p264
      %p451 = pneg %p261
      %s452 = smul.u32 8, %s24
      %p453 = scmp.lt.s32.totalorder %s23, 1
      %s454 = scalar_select %p453, %s23, 1
      %p455 = scmp.lt.s32.totalorder %s452, 7
      %s456 = scalar_select %p455, %s452, 7
      %s457 = smul.addr %s454, 8
      %s458 = sadd.s32 %s456, %s457
      %s459 = smul.addr %s458, 8
      %s460 = scalar_lea.vmem %s8, %s459
      %s461 = smul.u32 8, %s24
      %p462 = scmp.lt.s32.totalorder %s23, 1
      %s463 = scalar_select %p462, %s23, 1
      %p464 = scmp.lt.s32.totalorder %s461, 7
      %s465 = scalar_select %p464, %s461, 7
      %s466 = smul.addr %s465, 2
      %s467 = smul.addr %s463, 16
      %s468 = sadd.s32 %s466, %s467
      %s469 = smul.addr %s468, 4
      %s470 = scalar_lea.vmem %s0, %s469
      %s471 = smul.u32 8, %s24
      %s472 = smul.u32 8, %s24
      %p473 = scmp.lt.s32.totalorder %s23, 1
      %s474 = scalar_select %p473, %s23, 1
      %p475 = scmp.lt.s32.totalorder %s472, 7
      %s476 = scalar_select %p475, %s472, 7
      %s477 = smul.addr %s476, 2
      %s478 = smul.addr %s474, 16
      %s479 = sadd.s32 %s477, %s478
      %s480 = smul.addr %s479, 4
      %s481 = scalar_lea.vmem %s1, %s480
      %s482 = smul.u32 8, %s24
      %s483 = smul.u32 8, %s24
      %p484 = scmp.lt.s32.totalorder %s23, 1
      %s485 = scalar_select %p484, %s23, 1
      %p486 = scmp.lt.s32.totalorder %s483, 7
      %s487 = scalar_select %p486, %s483, 7
      %s488 = smul.addr %s485, 8
      %s489 = sadd.s32 %s487, %s488
      %s490 = smul.addr %s489, 4
      %s491 = scalar_lea.vmem %s2, %s490
      %s492 = smul.u32 8, %s24
      %s493 = smul.u32 8, %s24
      %p494 = scmp.lt.s32.totalorder %s23, 1
      %s495 = scalar_select %p494, %s23, 1
      %p496 = scmp.lt.s32.totalorder %s493, 7
      %s497 = scalar_select %p496, %s493, 7
      %s498 = smul.addr %s495, 8
      %s499 = sadd.s32 %s497, %s498
      %s500 = smul.addr %s499, 4
      %s501 = scalar_lea.vmem %s3, %s500
      %s502 = smul.u32 8, %s24
      %s503 = smul.u32 8, %s24
      %p504 = scmp.lt.s32.totalorder %s23, 1
      %s505 = scalar_select %p504, %s23, 1
      %p506 = scmp.lt.s32.totalorder %s503, 7
      %s507 = scalar_select %p506, %s503, 7
      %s508 = smul.addr %s507, 2
      %s509 = smul.addr %s505, 16
      %s510 = sadd.s32 %s508, %s509
      %s511 = smul.addr %s510, 4
      %s512 = scalar_lea.vmem %s4, %s511
      %s513 = smul.u32 8, %s24
      %s514 = smul.u32 8, %s24
      %p515 = scmp.lt.s32.totalorder %s23, 1
      %s516 = scalar_select %p515, %s23, 1
      %p517 = scmp.lt.s32.totalorder %s514, 7
      %s518 = scalar_select %p517, %s514, 7
      %s519 = smul.addr %s516, 8
      %s520 = sadd.s32 %s518, %s519
      %s521 = smul.addr %s520, 4
      %s522 = scalar_lea.vmem %s5, %s521
      %s523 = smul.u32 8, %s24
      %s524 = smul.u32 8, %s24
      %p525 = scmp.lt.s32.totalorder %s23, 1
      %s526 = scalar_select %p525, %s23, 1
      %p527 = scmp.lt.s32.totalorder %s524, 7
      %s528 = scalar_select %p527, %s524, 7
      %s529 = smul.addr %s526, 8
      %s530 = sadd.s32 %s528, %s529
      %s531 = smul.addr %s530, 8
      %s532 = scalar_lea.vmem %s8, %s531
      %s533 = smul.u32 8, %s24
      %v535 = vld [vmem:[%s470] sm:$0xf]
      %v536 = vld [vmem:[%s470 + $0x4] sm:$0x1]
      %v537 = vld [vmem:[%s470 + $0x8] sm:$0xf]
      %v538 = vld [vmem:[%s470 + $0xc] sm:$0x1]
      %v539 = vld [vmem:[%s470 + $0x10] sm:$0xf]
      %v540 = vld [vmem:[%s470 + $0x14] sm:$0x1]
      %v541 = vld [vmem:[%s470 + $0x18] sm:$0xf]
      %v542 = vld [vmem:[%s470 + $0x1c] sm:$0x1]
      %v543 = vld [vmem:[%s470 + $0x20] sm:$0xf]
      %v544 = vld [vmem:[%s470 + $0x24] sm:$0x1]
      %v545 = vld [vmem:[%s470 + $0x28] sm:$0xf]
      %v546 = vld [vmem:[%s470 + $0x2c] sm:$0x1]
      %v547 = vld [vmem:[%s470 + $0x30] sm:$0xf]
      %v548 = vld [vmem:[%s470 + $0x34] sm:$0x1]
      %v549 = vld [vmem:[%s470 + $0x38] sm:$0xf]
      %v550 = vld [vmem:[%s470 + $0x3c] sm:$0x1]
      %v551 = vld [vmem:[%s6] sm:$0xf]
      %v552 = vld [vmem:[%s6 + $0x4] sm:$0xf]
      %v553 = vld [vmem:[%s6 + $0x8] sm:$0xf]
      %v554 = vld [vmem:[%s6 + $0xc] sm:$0xf]
      %v555 = vld [vmem:[%s6 + $0x10] sm:$0xf]
      %v556 = vld [vmem:[%s6 + $0x14] sm:$0xf]
      %v557 = vld [vmem:[%s6 + $0x18] sm:$0xf]
      %v558 = vld [vmem:[%s6 + $0x1c] sm:$0xf]
      %v559 = vld [vmem:[%s491] sm:$0xf]
      %v560 = vld [vmem:[%s491 + $0x4] sm:$0xf]
      %v561 = vld [vmem:[%s491 + $0x8] sm:$0xf]
      %v562 = vld [vmem:[%s491 + $0xc] sm:$0xf]
      %v563 = vld [vmem:[%s491 + $0x10] sm:$0xf]
      %v564 = vld [vmem:[%s491 + $0x14] sm:$0xf]
      %v565 = vld [vmem:[%s491 + $0x18] sm:$0xf]
      %v566 = vld [vmem:[%s491 + $0x1c] sm:$0xf]
      %s567 = scalar_lea.vmem %s6, 32
      %v568 = vld [vmem:[%s567] sm:$0xf]
      %v569 = vld [vmem:[%s567 + $0x4] sm:$0xf]
      %v570 = vld [vmem:[%s567 + $0x8] sm:$0xf]
      %v571 = vld [vmem:[%s567 + $0xc] sm:$0xf]
      %v572 = vld [vmem:[%s567 + $0x10] sm:$0xf]
      %v573 = vld [vmem:[%s567 + $0x14] sm:$0xf]
      %v574 = vld [vmem:[%s567 + $0x18] sm:$0xf]
      %v575 = vld [vmem:[%s567 + $0x1c] sm:$0xf]
      %v584 = vunpack.c.l.b16 %v559
      %v585 = vunpack.c.l.b16 %v560
      %v586 = vunpack.c.l.b16 %v561
      %v587 = vunpack.c.l.b16 %v562
      %v588 = vunpack.c.l.b16 %v563
      %v589 = vunpack.c.l.b16 %v564
      %v590 = vunpack.c.l.b16 %v565
      %v591 = vunpack.c.l.b16 %v566
      %v592 = vpack.c.b16 %v585, %v584
      %v593 = vpack.c.b16 %v587, %v586
      %v594 = vpack.c.b16 %v589, %v588
      %v595 = vpack.c.b16 %v591, %v590
      %v604 = vunpack.c.l.b16 %v568
      %v605 = vunpack.c.l.b16 %v569
      %v606 = vunpack.c.l.b16 %v570
      %v607 = vunpack.c.l.b16 %v571
      %v608 = vunpack.c.l.b16 %v572
      %v609 = vunpack.c.l.b16 %v573
      %v610 = vunpack.c.l.b16 %v574
      %v611 = vunpack.c.l.b16 %v575
      %v612 = vpack.c.b16 %v605, %v604
      %v613 = vpack.c.b16 %v607, %v606
      %v614 = vpack.c.b16 %v609, %v608
      %v615 = vpack.c.b16 %v611, %v610
      %vm620 = vcmask 523264
      %v622 = vsel %vm620, %v592, 0
      %v625 = vsel %vm620, %v593, 0
      %v628 = vsel %vm620, %v594, 0
      %v631 = vsel %vm620, %v595, 0
      %633 = vmatprep.subr.bf16.mxu0 0
      %634 = vmatpush1.bf16.msra.mxu0 %v612
      %635 = vmatprep.subr.bf16.mxu0 0
      %636 = vmatpush1.bf16.msra.mxu0 %v613
      %637 = vmatprep.subr.bf16.mxu0 0
      %638 = vmatpush1.bf16.msra.mxu0 %v614
      %639 = vmatprep.subr.bf16.mxu0 0
      %640 = vmatpush1.bf16.msra.mxu0 %v615
      %641 = vmatprep.subr.bf16.mxu0 0
      %642 = vmatpush1.bf16.msra.mxu0 0
      %643 = vmatprep.subr.bf16.mxu0 0
      %644 = vmatpush1.bf16.msra.mxu0 0
      %645 = vmatprep.subr.bf16.mxu0 0
      %646 = vmatpush1.bf16.msra.mxu0 0
      %647 = vmatprep.subr.bf16.mxu0 0
      %648 = vmatpush1.bf16.msra.mxu0 0
      %649 = vmatprep.subr.bf16.mxu0 0
      %650 = vmatpush1.bf16.msra.mxu0 0
      %651 = vmatprep.subr.bf16.mxu0 0
      %652 = vmatpush1.bf16.msra.mxu0 0
      %653 = vmatprep.subr.bf16.mxu0 0
      %654 = vmatpush1.bf16.msra.mxu0 0
      %655 = vmatprep.subr.bf16.mxu0 0
      %656 = vmatpush1.bf16.msra.mxu0 0
      %657 = vmatprep.subr.bf16.mxu0 0
      %658 = vmatpush1.bf16.msra.mxu0 0
      %659 = vmatprep.subr.bf16.mxu0 0
      %660 = vmatpush1.bf16.msra.mxu0 0
      %661 = vmatprep.subr.bf16.mxu0 0
      %662 = vmatpush1.bf16.msra.mxu0 0
      %663 = vmatprep.subr.bf16.mxu0 0
      %664 = vmatpush1.bf16.msra.mxu0 0
      %665 = vmatprep.mubr.bf16.mxu0 0
      %666 = vmatmul.mubr.bf16.gmra.mrb[0].mxu0 %v622
      %v667 = vpop.f32.mrb[0].mxu0
      %v668 = vadd.f32 0.0, %v667
      %v669 = vpop.f32.mrb[0].mxu0
      %v670 = vpop.f32.mrb[0].mxu0
      %v671 = vadd.f32 0.0, %v670
      %v672 = vpop.f32.mrb[0].mxu0
      %673 = vmatprep.mubr.bf16.mxu0 0
      %674 = vmatmul.mubr.bf16.gmra.mrb[0].mxu0 %v625
      %v675 = vpop.f32.mrb[0].mxu0
      %v676 = vadd.f32 0.0, %v675
      %v677 = vpop.f32.mrb[0].mxu0
      %v678 = vpop.f32.mrb[0].mxu0
      %v679 = vadd.f32 0.0, %v678
      %v680 = vpop.f32.mrb[0].mxu0
      %681 = vmatprep.mubr.bf16.mxu0 0
      %682 = vmatmul.mubr.bf16.gmra.mrb[0].mxu0 %v628
      %v683 = vpop.f32.mrb[0].mxu0
      %v684 = vadd.f32 0.0, %v683
      %v685 = vpop.f32.mrb[0].mxu0
      %v686 = vpop.f32.mrb[0].mxu0
      %v687 = vadd.f32 0.0, %v686
      %v688 = vpop.f32.mrb[0].mxu0
      %689 = vmatprep.mubr.bf16.mxu0 0
      %690 = vmatmul.mubr.bf16.gmra.mrb[0].mxu0 %v631
      %v691 = vpop.f32.mrb[0].mxu0
      %v692 = vadd.f32 0.0, %v691
      %v693 = vpop.f32.mrb[0].mxu0
      %v694 = vpop.f32.mrb[0].mxu0
      %v695 = vadd.f32 0.0, %v694
      %v696 = vpop.f32.mrb[0].mxu0
      %697 = vdwg.mxu0
      %v706 = vunpack.c.l.b16 %v535
      %v707 = vunpack.c.l.b16 %v537
      %v708 = vunpack.c.l.b16 %v539
      %v709 = vunpack.c.l.b16 %v541
      %v710 = vunpack.c.l.b16 %v543
      %v711 = vunpack.c.l.b16 %v545
      %v712 = vunpack.c.l.b16 %v547
      %v713 = vunpack.c.l.b16 %v549
      %v714 = vpack.c.b16 %v707, %v706
      %v715 = vpack.c.b16 %v709, %v708
      %v716 = vpack.c.b16 %v711, %v710
      %v717 = vpack.c.b16 %v713, %v712
      %v726 = vunpack.c.l.b16 %v551
      %v727 = vunpack.c.l.b16 %v552
      %v728 = vunpack.c.l.b16 %v553
      %v729 = vunpack.c.l.b16 %v554
      %v730 = vunpack.c.l.b16 %v555
      %v731 = vunpack.c.l.b16 %v556
      %v732 = vunpack.c.l.b16 %v557
      %v733 = vunpack.c.l.b16 %v558
      %v734 = vpack.c.b16 %v727, %v726
      %v735 = vpack.c.b16 %v729, %v728
      %v736 = vpack.c.b16 %v731, %v730
      %v737 = vpack.c.b16 %v733, %v732
      %v743 = vsel %vm620, %v714, 0
      %v746 = vsel %vm620, %v715, 0
      %v749 = vsel %vm620, %v716, 0
      %v752 = vsel %vm620, %v717, 0
      %754 = vmatprep.subr.bf16.mxu0 0
      %755 = vmatpush1.bf16.msra.mxu0 %v734
      %756 = vmatprep.subr.bf16.mxu0 0
      %757 = vmatpush1.bf16.msra.mxu0 %v735
      %758 = vmatprep.subr.bf16.mxu0 0
      %759 = vmatpush1.bf16.msra.mxu0 %v736
      %760 = vmatprep.subr.bf16.mxu0 0
      %761 = vmatpush1.bf16.msra.mxu0 %v737
      %762 = vmatprep.subr.bf16.mxu0 0
      %763 = vmatpush1.bf16.msra.mxu0 0
      %764 = vmatprep.subr.bf16.mxu0 0
      %765 = vmatpush1.bf16.msra.mxu0 0
      %766 = vmatprep.subr.bf16.mxu0 0
      %767 = vmatpush1.bf16.msra.mxu0 0
      %768 = vmatprep.subr.bf16.mxu0 0
      %769 = vmatpush1.bf16.msra.mxu0 0
      %770 = vmatprep.subr.bf16.mxu0 0
      %771 = vmatpush1.bf16.msra.mxu0 0
      %772 = vmatprep.subr.bf16.mxu0 0
      %773 = vmatpush1.bf16.msra.mxu0 0
      %774 = vmatprep.subr.bf16.mxu0 0
      %775 = vmatpush1.bf16.msra.mxu0 0
      %776 = vmatprep.subr.bf16.mxu0 0
      %777 = vmatpush1.bf16.msra.mxu0 0
      %778 = vmatprep.subr.bf16.mxu0 0
      %779 = vmatpush1.bf16.msra.mxu0 0
      %780 = vmatprep.subr.bf16.mxu0 0
      %781 = vmatpush1.bf16.msra.mxu0 0
      %782 = vmatprep.subr.bf16.mxu0 0
      %783 = vmatpush1.bf16.msra.mxu0 0
      %784 = vmatprep.subr.bf16.mxu0 0
      %785 = vmatpush1.bf16.msra.mxu0 0
      %786 = vmatprep.mubr.bf16.mxu0 0
      %787 = vmatmul.mubr.bf16.gmra.mrb[0].mxu0 %v743
      %v788 = vpop.f32.mrb[0].mxu0
      %v789 = vadd.f32 %v668, %v788
      %v790 = vpop.f32.mrb[0].mxu0
      %v791 = vpop.f32.mrb[0].mxu0
      %v792 = vadd.f32 %v671, %v791
      %v793 = vpop.f32.mrb[0].mxu0
      %794 = vmatprep.mubr.bf16.mxu0 0
      %795 = vmatmul.mubr.bf16.gmra.mrb[0].mxu0 %v746
      %v796 = vpop.f32.mrb[0].mxu0
      %v797 = vadd.f32 %v676, %v796
      %v798 = vpop.f32.mrb[0].mxu0
      %v799 = vpop.f32.mrb[0].mxu0
      %v800 = vadd.f32 %v679, %v799
      %v801 = vpop.f32.mrb[0].mxu0
      %802 = vmatprep.mubr.bf16.mxu0 0
      %803 = vmatmul.mubr.bf16.gmra.mrb[0].mxu0 %v749
      %v804 = vpop.f32.mrb[0].mxu0
      %v805 = vadd.f32 %v684, %v804
      %v806 = vpop.f32.mrb[0].mxu0
      %v807 = vpop.f32.mrb[0].mxu0
      %v808 = vadd.f32 %v687, %v807
      %v809 = vpop.f32.mrb[0].mxu0
      %810 = vmatprep.mubr.bf16.mxu0 0
      %811 = vmatmul.mubr.bf16.gmra.mrb[0].mxu0 %v752
      %v812 = vpop.f32.mrb[0].mxu0
      %v813 = vadd.f32 %v692, %v812
      %v814 = vpop.f32.mrb[0].mxu0
      %v815 = vpop.f32.mrb[0].mxu0
      %v816 = vadd.f32 %v695, %v815
      %v817 = vpop.f32.mrb[0].mxu0
      %818 = vdwg.mxu0
      %vm819 = vsmask.f32 3328
      %vm820 = vsmask.f32 7440
      %vm821 = vmor %vm819, %vm820
      %v823 = vshrl.u32 %v535, 16
      %v825 = vrot.slane %v823, 4
      %v826 = vshll.u32 %v535, 16
      %v828 = vrot.slane %v826, 5
      %v829 = vor.u32 %v825, %v828
      %v830 = vrot.slane %v829, 4
      %v832 = vshll.u32 %v536, 16
      %v834 = vrot.slane %v832, 5
      %v835 = vsel %vm821, %v830, %v834
      %v837 = vshrl.u32 %v537, 16
      %v839 = vrot.slane %v837, 4
      %v840 = vshll.u32 %v537, 16
      %v842 = vrot.slane %v840, 5
      %v843 = vor.u32 %v839, %v842
      %v844 = vrot.slane %v843, 4
      %v846 = vshll.u32 %v538, 16
      %v848 = vrot.slane %v846, 5
      %v849 = vsel %vm821, %v844, %v848
      %v851 = vshrl.u32 %v539, 16
      %v853 = vrot.slane %v851, 4
      %v854 = vshll.u32 %v539, 16
      %v856 = vrot.slane %v854, 5
      %v857 = vor.u32 %v853, %v856
      %v858 = vrot.slane %v857, 4
      %v860 = vshll.u32 %v540, 16
      %v862 = vrot.slane %v860, 5
      %v863 = vsel %vm821, %v858, %v862
      %v865 = vshrl.u32 %v541, 16
      %v867 = vrot.slane %v865, 4
      %v868 = vshll.u32 %v541, 16
      %v870 = vrot.slane %v868, 5
      %v871 = vor.u32 %v867, %v870
      %v872 = vrot.slane %v871, 4
      %v874 = vshll.u32 %v542, 16
      %v876 = vrot.slane %v874, 5
      %v877 = vsel %vm821, %v872, %v876
      %v879 = vshrl.u32 %v543, 16
      %v881 = vrot.slane %v879, 4
      %v882 = vshll.u32 %v543, 16
      %v884 = vrot.slane %v882, 5
      %v885 = vor.u32 %v881, %v884
      %v886 = vrot.slane %v885, 4
      %v888 = vshll.u32 %v544, 16
      %v890 = vrot.slane %v888, 5
      %v891 = vsel %vm821, %v886, %v890
      %v893 = vshrl.u32 %v545, 16
      %v895 = vrot.slane %v893, 4
      %v896 = vshll.u32 %v545, 16
      %v898 = vrot.slane %v896, 5
      %v899 = vor.u32 %v895, %v898
      %v900 = vrot.slane %v899, 4
      %v902 = vshll.u32 %v546, 16
      %v904 = vrot.slane %v902, 5
      %v905 = vsel %vm821, %v900, %v904
      %v907 = vshrl.u32 %v547, 16
      %v909 = vrot.slane %v907, 4
      %v910 = vshll.u32 %v547, 16
      %v912 = vrot.slane %v910, 5
      %v913 = vor.u32 %v909, %v912
      %v914 = vrot.slane %v913, 4
      %v916 = vshll.u32 %v548, 16
      %v918 = vrot.slane %v916, 5
      %v919 = vsel %vm821, %v914, %v918
      %v921 = vshrl.u32 %v549, 16
      %v923 = vrot.slane %v921, 4
      %v924 = vshll.u32 %v549, 16
      %v926 = vrot.slane %v924, 5
      %v927 = vor.u32 %v923, %v926
      %v928 = vrot.slane %v927, 4
      %v930 = vshll.u32 %v550, 16
      %v932 = vrot.slane %v930, 5
      %v933 = vsel %vm821, %v928, %v932
      %s934 = scalar_lea.vmem %s6, 64
      %v935 = vld [vmem:[%s934] sm:$0xf]
      %v936 = vld [vmem:[%s934 + $0x4] sm:$0xf]
      %v937 = vld [vmem:[%s934 + $0x8] sm:$0xf]
      %v938 = vld [vmem:[%s934 + $0xc] sm:$0xf]
      %v939 = vld [vmem:[%s934 + $0x10] sm:$0xf]
      %v940 = vld [vmem:[%s934 + $0x14] sm:$0xf]
      %v941 = vld [vmem:[%s934 + $0x18] sm:$0xf]
      %v942 = vld [vmem:[%s934 + $0x1c] sm:$0xf]
      %v943 = vunpack.c.l.b16 %v835
      %v944 = vunpack.c.l.b16 %v849
      %v945 = vunpack.c.l.b16 %v863
      %v946 = vunpack.c.l.b16 %v877
      %v947 = vunpack.c.l.b16 %v891
      %v948 = vunpack.c.l.b16 %v905
      %v949 = vunpack.c.l.b16 %v919
      %v950 = vunpack.c.l.b16 %v933
      %v951 = vpack.c.b16 %v944, %v943
      %v952 = vpack.c.b16 %v946, %v945
      %v953 = vpack.c.b16 %v948, %v947
      %v954 = vpack.c.b16 %v950, %v949
      %v963 = vunpack.c.l.b16 %v935
      %v964 = vunpack.c.l.b16 %v936
      %v965 = vunpack.c.l.b16 %v937
      %v966 = vunpack.c.l.b16 %v938
      %v967 = vunpack.c.l.b16 %v939
      %v968 = vunpack.c.l.b16 %v940
      %v969 = vunpack.c.l.b16 %v941
      %v970 = vunpack.c.l.b16 %v942
      %v971 = vpack.c.b16 %v964, %v963
      %v972 = vpack.c.b16 %v966, %v965
      %v973 = vpack.c.b16 %v968, %v967
      %v974 = vpack.c.b16 %v970, %v969
      %v980 = vsel %vm620, %v951, 0
      %v983 = vsel %vm620, %v952, 0
      %v986 = vsel %vm620, %v953, 0
      %v989 = vsel %vm620, %v954, 0
      %991 = vmatprep.subr.bf16.mxu0 0
      %992 = vmatpush1.bf16.msra.mxu0 %v971
      %993 = vmatprep.subr.bf16.mxu0 0
      %994 = vmatpush1.bf16.msra.mxu0 %v972
      %995 = vmatprep.subr.bf16.mxu0 0
      %996 = vmatpush1.bf16.msra.mxu0 %v973
      %997 = vmatprep.subr.bf16.mxu0 0
      %998 = vmatpush1.bf16.msra.mxu0 %v974
      %999 = vmatprep.subr.bf16.mxu0 0
      %1000 = vmatpush1.bf16.msra.mxu0 0
      %1001 = vmatprep.subr.bf16.mxu0 0
      %1002 = vmatpush1.bf16.msra.mxu0 0
      %1003 = vmatprep.subr.bf16.mxu0 0
      %1004 = vmatpush1.bf16.msra.mxu0 0
      %1005 = vmatprep.subr.bf16.mxu0 0
      %1006 = vmatpush1.bf16.msra.mxu0 0
      %1007 = vmatprep.subr.bf16.mxu0 0
      %1008 = vmatpush1.bf16.msra.mxu0 0
      %1009 = vmatprep.subr.bf16.mxu0 0
      %1010 = vmatpush1.bf16.msra.mxu0 0
      %1011 = vmatprep.subr.bf16.mxu0 0
      %1012 = vmatpush1.bf16.msra.mxu0 0
      %1013 = vmatprep.subr.bf16.mxu0 0
      %1014 = vmatpush1.bf16.msra.mxu0 0
      %1015 = vmatprep.subr.bf16.mxu0 0
      %1016 = vmatpush1.bf16.msra.mxu0 0
      %1017 = vmatprep.subr.bf16.mxu0 0
      %1018 = vmatpush1.bf16.msra.mxu0 0
      %1019 = vmatprep.subr.bf16.mxu0 0
      %1020 = vmatpush1.bf16.msra.mxu0 0
      %1021 = vmatprep.subr.bf16.mxu0 0
      %1022 = vmatpush1.bf16.msra.mxu0 0
      %1023 = vmatprep.mubr.bf16.mxu0 0
      %1024 = vmatmul.mubr.bf16.gmra.mrb[0].mxu0 %v980
      %v1025 = vpop.f32.mrb[0].mxu0
      %v1026 = vadd.f32 0.0, %v1025
      %v1027 = vpop.f32.mrb[0].mxu0
      %v1028 = vpop.f32.mrb[0].mxu0
      %v1029 = vadd.f32 0.0, %v1028
      %v1030 = vpop.f32.mrb[0].mxu0
      %1031 = vmatprep.mubr.bf16.mxu0 0
      %1032 = vmatmul.mubr.bf16.gmra.mrb[0].mxu0 %v983
      %v1033 = vpop.f32.mrb[0].mxu0
      %v1034 = vadd.f32 0.0, %v1033
      %v1035 = vpop.f32.mrb[0].mxu0
      %v1036 = vpop.f32.mrb[0].mxu0
      %v1037 = vadd.f32 0.0, %v1036
      %v1038 = vpop.f32.mrb[0].mxu0
      %1039 = vmatprep.mubr.bf16.mxu0 0
      %1040 = vmatmul.mubr.bf16.gmra.mrb[0].mxu0 %v986
      %v1041 = vpop.f32.mrb[0].mxu0
      %v1042 = vadd.f32 0.0, %v1041
      %v1043 = vpop.f32.mrb[0].mxu0
      %v1044 = vpop.f32.mrb[0].mxu0
      %v1045 = vadd.f32 0.0, %v1044
      %v1046 = vpop.f32.mrb[0].mxu0
      %1047 = vmatprep.mubr.bf16.mxu0 0
      %1048 = vmatmul.mubr.bf16.gmra.mrb[0].mxu0 %v989
      %v1049 = vpop.f32.mrb[0].mxu0
      %v1050 = vadd.f32 0.0, %v1049
      %v1051 = vpop.f32.mrb[0].mxu0
      %v1052 = vpop.f32.mrb[0].mxu0
      %v1053 = vadd.f32 0.0, %v1052
      %v1054 = vpop.f32.mrb[0].mxu0
      %1055 = vdwg.mxu0
      %v1056 = vadd.f32 %v789, %v1026
      %v1057 = vadd.f32 %v792, %v1029
      %v1058 = vadd.f32 %v797, %v1034
      %v1059 = vadd.f32 %v800, %v1037
      %v1060 = vadd.f32 %v805, %v1042
      %v1061 = vadd.f32 %v808, %v1045
      %v1062 = vadd.f32 %v813, %v1050
      %v1063 = vadd.f32 %v816, %v1053
      %v1064 = vld [vmem:[%s512] sm:$0xf]
      %v1065 = vld [vmem:[%s512 + $0x4] sm:$0x1]
      %v1066 = vld [vmem:[%s512 + $0x8] sm:$0xf]
      %v1067 = vld [vmem:[%s512 + $0xc] sm:$0x1]
      %v1068 = vld [vmem:[%s512 + $0x10] sm:$0xf]
      %v1069 = vld [vmem:[%s512 + $0x14] sm:$0x1]
      %v1070 = vld [vmem:[%s512 + $0x18] sm:$0xf]
      %v1071 = vld [vmem:[%s512 + $0x1c] sm:$0x1]
      %v1072 = vld [vmem:[%s512 + $0x20] sm:$0xf]
      %v1073 = vld [vmem:[%s512 + $0x24] sm:$0x1]
      %v1074 = vld [vmem:[%s512 + $0x28] sm:$0xf]
      %v1075 = vld [vmem:[%s512 + $0x2c] sm:$0x1]
      %v1076 = vld [vmem:[%s512 + $0x30] sm:$0xf]
      %v1077 = vld [vmem:[%s512 + $0x34] sm:$0x1]
      %v1078 = vld [vmem:[%s512 + $0x38] sm:$0xf]
      %v1079 = vld [vmem:[%s512 + $0x3c] sm:$0x1]
      %s1080 = scalar_lea.vmem %s6, 96
      %v1081 = vld [vmem:[%s1080] sm:$0xf]
      %v1082 = vld [vmem:[%s1080 + $0x4] sm:$0xf]
      %v1083 = vld [vmem:[%s1080 + $0x8] sm:$0xf]
      %v1084 = vld [vmem:[%s1080 + $0xc] sm:$0xf]
      %v1085 = vld [vmem:[%s1080 + $0x10] sm:$0xf]
      %v1086 = vld [vmem:[%s1080 + $0x14] sm:$0xf]
      %v1087 = vld [vmem:[%s1080 + $0x18] sm:$0xf]
      %v1088 = vld [vmem:[%s1080 + $0x1c] sm:$0xf]
      %v1097 = vunpack.c.l.b16 %v1064
      %v1098 = vunpack.c.l.b16 %v1066
      %v1099 = vunpack.c.l.b16 %v1068
      %v1100 = vunpack.c.l.b16 %v1070
      %v1101 = vunpack.c.l.b16 %v1072
      %v1102 = vunpack.c.l.b16 %v1074
      %v1103 = vunpack.c.l.b16 %v1076
      %v1104 = vunpack.c.l.b16 %v1078
      %v1105 = vpack.c.b16 %v1098, %v1097
      %v1106 = vpack.c.b16 %v1100, %v1099
      %v1107 = vpack.c.b16 %v1102, %v1101
      %v1108 = vpack.c.b16 %v1104, %v1103
      %v1117 = vunpack.c.l.b16 %v1081
      %v1118 = vunpack.c.l.b16 %v1082
      %v1119 = vunpack.c.l.b16 %v1083
      %v1120 = vunpack.c.l.b16 %v1084
      %v1121 = vunpack.c.l.b16 %v1085
      %v1122 = vunpack.c.l.b16 %v1086
      %v1123 = vunpack.c.l.b16 %v1087
      %v1124 = vunpack.c.l.b16 %v1088
      %v1125 = vpack.c.b16 %v1118, %v1117
      %v1126 = vpack.c.b16 %v1120, %v1119
      %v1127 = vpack.c.b16 %v1122, %v1121
      %v1128 = vpack.c.b16 %v1124, %v1123
      %v1134 = vsel %vm620, %v1105, 0
      %v1137 = vsel %vm620, %v1106, 0
      %v1140 = vsel %vm620, %v1107, 0
      %v1143 = vsel %vm620, %v1108, 0
      %1145 = vmatprep.subr.bf16.mxu0 0
      %1146 = vmatpush1.bf16.msra.mxu0 %v1125
      %1147 = vmatprep.subr.bf16.mxu0 0
      %1148 = vmatpush1.bf16.msra.mxu0 %v1126
      %1149 = vmatprep.subr.bf16.mxu0 0
      %1150 = vmatpush1.bf16.msra.mxu0 %v1127
      %1151 = vmatprep.subr.bf16.mxu0 0
      %1152 = vmatpush1.bf16.msra.mxu0 %v1128
      %1153 = vmatprep.subr.bf16.mxu0 0
      %1154 = vmatpush1.bf16.msra.mxu0 0
      %1155 = vmatprep.subr.bf16.mxu0 0
      %1156 = vmatpush1.bf16.msra.mxu0 0
      %1157 = vmatprep.subr.bf16.mxu0 0
      %1158 = vmatpush1.bf16.msra.mxu0 0
      %1159 = vmatprep.subr.bf16.mxu0 0
      %1160 = vmatpush1.bf16.msra.mxu0 0
      %1161 = vmatprep.subr.bf16.mxu0 0
      %1162 = vmatpush1.bf16.msra.mxu0 0
      %1163 = vmatprep.subr.bf16.mxu0 0
      %1164 = vmatpush1.bf16.msra.mxu0 0
      %1165 = vmatprep.subr.bf16.mxu0 0
      %1166 = vmatpush1.bf16.msra.mxu0 0
      %1167 = vmatprep.subr.bf16.mxu0 0
      %1168 = vmatpush1.bf16.msra.mxu0 0
      %1169 = vmatprep.subr.bf16.mxu0 0
      %1170 = vmatpush1.bf16.msra.mxu0 0
      %1171 = vmatprep.subr.bf16.mxu0 0
      %1172 = vmatpush1.bf16.msra.mxu0 0
      %1173 = vmatprep.subr.bf16.mxu0 0
      %1174 = vmatpush1.bf16.msra.mxu0 0
      %1175 = vmatprep.subr.bf16.mxu0 0
      %1176 = vmatpush1.bf16.msra.mxu0 0
      %1177 = vmatprep.mubr.bf16.mxu0 0
      %1178 = vmatmul.mubr.bf16.gmra.mrb[0].mxu0 %v1134
      %v1179 = vpop.f32.mrb[0].mxu0
      %v1180 = vadd.f32 0.0, %v1179
      %v1181 = vpop.f32.mrb[0].mxu0
      %v1182 = vpop.f32.mrb[0].mxu0
      %v1183 = vadd.f32 0.0, %v1182
      %v1184 = vpop.f32.mrb[0].mxu0
      %1185 = vmatprep.mubr.bf16.mxu0 0
      %1186 = vmatmul.mubr.bf16.gmra.mrb[0].mxu0 %v1137
      %v1187 = vpop.f32.mrb[0].mxu0
      %v1188 = vadd.f32 0.0, %v1187
      %v1189 = vpop.f32.mrb[0].mxu0
      %v1190 = vpop.f32.mrb[0].mxu0
      %v1191 = vadd.f32 0.0, %v1190
      %v1192 = vpop.f32.mrb[0].mxu0
      %1193 = vmatprep.mubr.bf16.mxu0 0
      %1194 = vmatmul.mubr.bf16.gmra.mrb[0].mxu0 %v1140
      %v1195 = vpop.f32.mrb[0].mxu0
      %v1196 = vadd.f32 0.0, %v1195
      %v1197 = vpop.f32.mrb[0].mxu0
      %v1198 = vpop.f32.mrb[0].mxu0
      %v1199 = vadd.f32 0.0, %v1198
      %v1200 = vpop.f32.mrb[0].mxu0
      %1201 = vmatprep.mubr.bf16.mxu0 0
      %1202 = vmatmul.mubr.bf16.gmra.mrb[0].mxu0 %v1143
      %v1203 = vpop.f32.mrb[0].mxu0
      %v1204 = vadd.f32 0.0, %v1203
      %v1205 = vpop.f32.mrb[0].mxu0
      %v1206 = vpop.f32.mrb[0].mxu0
      %v1207 = vadd.f32 0.0, %v1206
      %v1208 = vpop.f32.mrb[0].mxu0
      %1209 = vdwg.mxu0
      %v1210 = vadd.f32 %v1056, %v1180
      %v1211 = vadd.f32 %v1057, %v1183
      %v1212 = vadd.f32 %v1058, %v1188
      %v1213 = vadd.f32 %v1059, %v1191
      %v1214 = vadd.f32 %v1060, %v1196
      %v1215 = vadd.f32 %v1061, %v1199
      %v1216 = vadd.f32 %v1062, %v1204
      %v1217 = vadd.f32 %v1063, %v1207
      %v1218 = vld [vmem:[%s522] sm:$0xf]
      %v1219 = vld [vmem:[%s522 + $0x4] sm:$0xf]
      %v1220 = vld [vmem:[%s522 + $0x8] sm:$0xf]
      %v1221 = vld [vmem:[%s522 + $0xc] sm:$0xf]
      %v1222 = vld [vmem:[%s522 + $0x10] sm:$0xf]
      %v1223 = vld [vmem:[%s522 + $0x14] sm:$0xf]
      %v1224 = vld [vmem:[%s522 + $0x18] sm:$0xf]
      %v1225 = vld [vmem:[%s522 + $0x1c] sm:$0xf]
      %s1226 = scalar_lea.vmem %s6, 128
      %v1227 = vld [vmem:[%s1226] sm:$0xf]
      %v1228 = vld [vmem:[%s1226 + $0x4] sm:$0xf]
      %v1229 = vld [vmem:[%s1226 + $0x8] sm:$0xf]
      %v1230 = vld [vmem:[%s1226 + $0xc] sm:$0xf]
      %v1231 = vld [vmem:[%s1226 + $0x10] sm:$0xf]
      %v1232 = vld [vmem:[%s1226 + $0x14] sm:$0xf]
      %v1233 = vld [vmem:[%s1226 + $0x18] sm:$0xf]
      %v1234 = vld [vmem:[%s1226 + $0x1c] sm:$0xf]
      %v1243 = vunpack.c.l.b16 %v1218
      %v1244 = vunpack.c.l.b16 %v1219
      %v1245 = vunpack.c.l.b16 %v1220
      %v1246 = vunpack.c.l.b16 %v1221
      %v1247 = vunpack.c.l.b16 %v1222
      %v1248 = vunpack.c.l.b16 %v1223
      %v1249 = vunpack.c.l.b16 %v1224
      %v1250 = vunpack.c.l.b16 %v1225
      %v1251 = vpack.c.b16 %v1244, %v1243
      %v1252 = vpack.c.b16 %v1246, %v1245
      %v1253 = vpack.c.b16 %v1248, %v1247
      %v1254 = vpack.c.b16 %v1250, %v1249
      %v1263 = vunpack.c.l.b16 %v1227
      %v1264 = vunpack.c.l.b16 %v1228
      %v1265 = vunpack.c.l.b16 %v1229
      %v1266 = vunpack.c.l.b16 %v1230
      %v1267 = vunpack.c.l.b16 %v1231
      %v1268 = vunpack.c.l.b16 %v1232
      %v1269 = vunpack.c.l.b16 %v1233
      %v1270 = vunpack.c.l.b16 %v1234
      %v1271 = vpack.c.b16 %v1264, %v1263
      %v1272 = vpack.c.b16 %v1266, %v1265
      %v1273 = vpack.c.b16 %v1268, %v1267
      %v1274 = vpack.c.b16 %v1270, %v1269
      %v1280 = vsel %vm620, %v1251, 0
      %v1283 = vsel %vm620, %v1252, 0
      %v1286 = vsel %vm620, %v1253, 0
      %v1289 = vsel %vm620, %v1254, 0
      %1291 = vmatprep.subr.bf16.mxu0 0
      %1292 = vmatpush1.bf16.msra.mxu0 %v1271
      %1293 = vmatprep.subr.bf16.mxu0 0
      %1294 = vmatpush1.bf16.msra.mxu0 %v1272
      %1295 = vmatprep.subr.bf16.mxu0 0
      %1296 = vmatpush1.bf16.msra.mxu0 %v1273
      %1297 = vmatprep.subr.bf16.mxu0 0
      %1298 = vmatpush1.bf16.msra.mxu0 %v1274
      %1299 = vmatprep.subr.bf16.mxu0 0
      %1300 = vmatpush1.bf16.msra.mxu0 0
      %1301 = vmatprep.subr.bf16.mxu0 0
      %1302 = vmatpush1.bf16.msra.mxu0 0
      %1303 = vmatprep.subr.bf16.mxu0 0
      %1304 = vmatpush1.bf16.msra.mxu0 0
      %1305 = vmatprep.subr.bf16.mxu0 0
      %1306 = vmatpush1.bf16.msra.mxu0 0
      %1307 = vmatprep.subr.bf16.mxu0 0
      %1308 = vmatpush1.bf16.msra.mxu0 0
      %1309 = vmatprep.subr.bf16.mxu0 0
      %1310 = vmatpush1.bf16.msra.mxu0 0
      %1311 = vmatprep.subr.bf16.mxu0 0
      %1312 = vmatpush1.bf16.msra.mxu0 0
      %1313 = vmatprep.subr.bf16.mxu0 0
      %1314 = vmatpush1.bf16.msra.mxu0 0
      %1315 = vmatprep.subr.bf16.mxu0 0
      %1316 = vmatpush1.bf16.msra.mxu0 0
      %1317 = vmatprep.subr.bf16.mxu0 0
      %1318 = vmatpush1.bf16.msra.mxu0 0
      %1319 = vmatprep.subr.bf16.mxu0 0
      %1320 = vmatpush1.bf16.msra.mxu0 0
      %1321 = vmatprep.subr.bf16.mxu0 0
      %1322 = vmatpush1.bf16.msra.mxu0 0
      %1323 = vmatprep.mubr.bf16.mxu0 0
      %1324 = vmatmul.mubr.bf16.gmra.mrb[0].mxu0 %v1280
      %v1325 = vpop.f32.mrb[0].mxu0
      %v1326 = vadd.f32 0.0, %v1325
      %v1327 = vpop.f32.mrb[0].mxu0
      %v1328 = vpop.f32.mrb[0].mxu0
      %v1329 = vadd.f32 0.0, %v1328
      %v1330 = vpop.f32.mrb[0].mxu0
      %1331 = vmatprep.mubr.bf16.mxu0 0
      %1332 = vmatmul.mubr.bf16.gmra.mrb[0].mxu0 %v1283
      %v1333 = vpop.f32.mrb[0].mxu0
      %v1334 = vadd.f32 0.0, %v1333
      %v1335 = vpop.f32.mrb[0].mxu0
      %v1336 = vpop.f32.mrb[0].mxu0
      %v1337 = vadd.f32 0.0, %v1336
      %v1338 = vpop.f32.mrb[0].mxu0
      %1339 = vmatprep.mubr.bf16.mxu0 0
      %1340 = vmatmul.mubr.bf16.gmra.mrb[0].mxu0 %v1286
      %v1341 = vpop.f32.mrb[0].mxu0
      %v1342 = vadd.f32 0.0, %v1341
      %v1343 = vpop.f32.mrb[0].mxu0
      %v1344 = vpop.f32.mrb[0].mxu0
      %v1345 = vadd.f32 0.0, %v1344
      %v1346 = vpop.f32.mrb[0].mxu0
      %1347 = vmatprep.mubr.bf16.mxu0 0
      %1348 = vmatmul.mubr.bf16.gmra.mrb[0].mxu0 %v1289
      %v1349 = vpop.f32.mrb[0].mxu0
      %v1350 = vadd.f32 0.0, %v1349
      %v1351 = vpop.f32.mrb[0].mxu0
      %v1352 = vpop.f32.mrb[0].mxu0
      %v1353 = vadd.f32 0.0, %v1352
      %v1354 = vpop.f32.mrb[0].mxu0
      %1355 = vdwg.mxu0
      %v1356 = vadd.f32 %v1210, %v1326
      %v1357 = vadd.f32 %v1211, %v1329
      %v1358 = vadd.f32 %v1212, %v1334
      %v1359 = vadd.f32 %v1213, %v1337
      %v1360 = vadd.f32 %v1214, %v1342
      %v1361 = vadd.f32 %v1215, %v1345
      %v1362 = vadd.f32 %v1216, %v1350
      %v1363 = vadd.f32 %v1217, %v1353
      %v1365 = vshrl.u32 %v1064, 16
      %v1367 = vrot.slane %v1365, 4
      %v1368 = vshll.u32 %v1064, 16
      %v1370 = vrot.slane %v1368, 5
      %v1371 = vor.u32 %v1367, %v1370
      %v1372 = vrot.slane %v1371, 4
      %v1374 = vshll.u32 %v1065, 16
      %v1376 = vrot.slane %v1374, 5
      %v1377 = vsel %vm821, %v1372, %v1376
      %v1379 = vshrl.u32 %v1066, 16
      %v1381 = vrot.slane %v1379, 4
      %v1382 = vshll.u32 %v1066, 16
      %v1384 = vrot.slane %v1382, 5
      %v1385 = vor.u32 %v1381, %v1384
      %v1386 = vrot.slane %v1385, 4
      %v1388 = vshll.u32 %v1067, 16
      %v1390 = vrot.slane %v1388, 5
      %v1391 = vsel %vm821, %v1386, %v1390
      %v1393 = vshrl.u32 %v1068, 16
      %v1395 = vrot.slane %v1393, 4
      %v1396 = vshll.u32 %v1068, 16
      %v1398 = vrot.slane %v1396, 5
      %v1399 = vor.u32 %v1395, %v1398
      %v1400 = vrot.slane %v1399, 4
      %v1402 = vshll.u32 %v1069, 16
      %v1404 = vrot.slane %v1402, 5
      %v1405 = vsel %vm821, %v1400, %v1404
      %v1407 = vshrl.u32 %v1070, 16
      %v1409 = vrot.slane %v1407, 4
      %v1410 = vshll.u32 %v1070, 16
      %v1412 = vrot.slane %v1410, 5
      %v1413 = vor.u32 %v1409, %v1412
      %v1414 = vrot.slane %v1413, 4
      %v1416 = vshll.u32 %v1071, 16
      %v1418 = vrot.slane %v1416, 5
      %v1419 = vsel %vm821, %v1414, %v1418
      %v1421 = vshrl.u32 %v1072, 16
      %v1423 = vrot.slane %v1421, 4
      %v1424 = vshll.u32 %v1072, 16
      %v1426 = vrot.slane %v1424, 5
      %v1427 = vor.u32 %v1423, %v1426
      %v1428 = vrot.slane %v1427, 4
      %v1430 = vshll.u32 %v1073, 16
      %v1432 = vrot.slane %v1430, 5
      %v1433 = vsel %vm821, %v1428, %v1432
      %v1435 = vshrl.u32 %v1074, 16
      %v1437 = vrot.slane %v1435, 4
      %v1438 = vshll.u32 %v1074, 16
      %v1440 = vrot.slane %v1438, 5
      %v1441 = vor.u32 %v1437, %v1440
      %v1442 = vrot.slane %v1441, 4
      %v1444 = vshll.u32 %v1075, 16
      %v1446 = vrot.slane %v1444, 5
      %v1447 = vsel %vm821, %v1442, %v1446
      %v1449 = vshrl.u32 %v1076, 16
      %v1451 = vrot.slane %v1449, 4
      %v1452 = vshll.u32 %v1076, 16
      %v1454 = vrot.slane %v1452, 5
      %v1455 = vor.u32 %v1451, %v1454
      %v1456 = vrot.slane %v1455, 4
      %v1458 = vshll.u32 %v1077, 16
      %v1460 = vrot.slane %v1458, 5
      %v1461 = vsel %vm821, %v1456, %v1460
      %v1463 = vshrl.u32 %v1078, 16
      %v1465 = vrot.slane %v1463, 4
      %v1466 = vshll.u32 %v1078, 16
      %v1468 = vrot.slane %v1466, 5
      %v1469 = vor.u32 %v1465, %v1468
      %v1470 = vrot.slane %v1469, 4
      %v1472 = vshll.u32 %v1079, 16
      %v1474 = vrot.slane %v1472, 5
      %v1475 = vsel %vm821, %v1470, %v1474
      %s1476 = scalar_lea.vmem %s6, 160
      %v1477 = vld [vmem:[%s1476] sm:$0xf]
      %v1478 = vld [vmem:[%s1476 + $0x4] sm:$0xf]
      %v1479 = vld [vmem:[%s1476 + $0x8] sm:$0xf]
      %v1480 = vld [vmem:[%s1476 + $0xc] sm:$0xf]
      %v1481 = vld [vmem:[%s1476 + $0x10] sm:$0xf]
      %v1482 = vld [vmem:[%s1476 + $0x14] sm:$0xf]
      %v1483 = vld [vmem:[%s1476 + $0x18] sm:$0xf]
      %v1484 = vld [vmem:[%s1476 + $0x1c] sm:$0xf]
      %v1485 = vunpack.c.l.b16 %v1377
      %v1486 = vunpack.c.l.b16 %v1391
      %v1487 = vunpack.c.l.b16 %v1405
      %v1488 = vunpack.c.l.b16 %v1419
      %v1489 = vunpack.c.l.b16 %v1433
      %v1490 = vunpack.c.l.b16 %v1447
      %v1491 = vunpack.c.l.b16 %v1461
      %v1492 = vunpack.c.l.b16 %v1475
      %v1493 = vpack.c.b16 %v1486, %v1485
      %v1494 = vpack.c.b16 %v1488, %v1487
      %v1495 = vpack.c.b16 %v1490, %v1489
      %v1496 = vpack.c.b16 %v1492, %v1491
      %v1505 = vunpack.c.l.b16 %v1477
      %v1506 = vunpack.c.l.b16 %v1478
      %v1507 = vunpack.c.l.b16 %v1479
      %v1508 = vunpack.c.l.b16 %v1480
      %v1509 = vunpack.c.l.b16 %v1481
      %v1510 = vunpack.c.l.b16 %v1482
      %v1511 = vunpack.c.l.b16 %v1483
      %v1512 = vunpack.c.l.b16 %v1484
      %v1513 = vpack.c.b16 %v1506, %v1505
      %v1514 = vpack.c.b16 %v1508, %v1507
      %v1515 = vpack.c.b16 %v1510, %v1509
      %v1516 = vpack.c.b16 %v1512, %v1511
      %v1522 = vsel %vm620, %v1493, 0
      %v1525 = vsel %vm620, %v1494, 0
      %v1528 = vsel %vm620, %v1495, 0
      %v1531 = vsel %vm620, %v1496, 0
      %1533 = vmatprep.subr.bf16.mxu0 0
      %1534 = vmatpush1.bf16.msra.mxu0 %v1513
      %1535 = vmatprep.subr.bf16.mxu0 0
      %1536 = vmatpush1.bf16.msra.mxu0 %v1514
      %1537 = vmatprep.subr.bf16.mxu0 0
      %1538 = vmatpush1.bf16.msra.mxu0 %v1515
      %1539 = vmatprep.subr.bf16.mxu0 0
      %1540 = vmatpush1.bf16.msra.mxu0 %v1516
      %1541 = vmatprep.subr.bf16.mxu0 0
      %1542 = vmatpush1.bf16.msra.mxu0 0
      %1543 = vmatprep.subr.bf16.mxu0 0
      %1544 = vmatpush1.bf16.msra.mxu0 0
      %1545 = vmatprep.subr.bf16.mxu0 0
      %1546 = vmatpush1.bf16.msra.mxu0 0
      %1547 = vmatprep.subr.bf16.mxu0 0
      %1548 = vmatpush1.bf16.msra.mxu0 0
      %1549 = vmatprep.subr.bf16.mxu0 0
      %1550 = vmatpush1.bf16.msra.mxu0 0
      %1551 = vmatprep.subr.bf16.mxu0 0
      %1552 = vmatpush1.bf16.msra.mxu0 0
      %1553 = vmatprep.subr.bf16.mxu0 0
      %1554 = vmatpush1.bf16.msra.mxu0 0
      %1555 = vmatprep.subr.bf16.mxu0 0
      %1556 = vmatpush1.bf16.msra.mxu0 0
      %1557 = vmatprep.subr.bf16.mxu0 0
      %1558 = vmatpush1.bf16.msra.mxu0 0
      %1559 = vmatprep.subr.bf16.mxu0 0
      %1560 = vmatpush1.bf16.msra.mxu0 0
      %1561 = vmatprep.subr.bf16.mxu0 0
      %1562 = vmatpush1.bf16.msra.mxu0 0
      %1563 = vmatprep.subr.bf16.mxu0 0
      %1564 = vmatpush1.bf16.msra.mxu0 0
      %1565 = vmatprep.mubr.bf16.mxu0 0
      %1566 = vmatmul.mubr.bf16.gmra.mrb[0].mxu0 %v1522
      %v1567 = vpop.f32.mrb[0].mxu0
      %v1568 = vadd.f32 0.0, %v1567
      %v1569 = vpop.f32.mrb[0].mxu0
      %v1570 = vpop.f32.mrb[0].mxu0
      %v1571 = vadd.f32 0.0, %v1570
      %v1572 = vpop.f32.mrb[0].mxu0
      %1573 = vmatprep.mubr.bf16.mxu0 0
      %1574 = vmatmul.mubr.bf16.gmra.mrb[0].mxu0 %v1525
      %v1575 = vpop.f32.mrb[0].mxu0
      %v1576 = vadd.f32 0.0, %v1575
      %v1577 = vpop.f32.mrb[0].mxu0
      %v1578 = vpop.f32.mrb[0].mxu0
      %v1579 = vadd.f32 0.0, %v1578
      %v1580 = vpop.f32.mrb[0].mxu0
      %1581 = vmatprep.mubr.bf16.mxu0 0
      %1582 = vmatmul.mubr.bf16.gmra.mrb[0].mxu0 %v1528
      %v1583 = vpop.f32.mrb[0].mxu0
      %v1584 = vadd.f32 0.0, %v1583
      %v1585 = vpop.f32.mrb[0].mxu0
      %v1586 = vpop.f32.mrb[0].mxu0
      %v1587 = vadd.f32 0.0, %v1586
      %v1588 = vpop.f32.mrb[0].mxu0
      %1589 = vmatprep.mubr.bf16.mxu0 0
      %1590 = vmatmul.mubr.bf16.gmra.mrb[0].mxu0 %v1531
      %v1591 = vpop.f32.mrb[0].mxu0
      %v1592 = vadd.f32 0.0, %v1591
      %v1593 = vpop.f32.mrb[0].mxu0
      %v1594 = vpop.f32.mrb[0].mxu0
      %v1595 = vadd.f32 0.0, %v1594
      %v1596 = vpop.f32.mrb[0].mxu0
      %1597 = vdwg.mxu0
      %v1598 = vadd.f32 %v1356, %v1568
      %v1599 = vadd.f32 %v1357, %v1571
      %v1600 = vadd.f32 %v1358, %v1576
      %v1601 = vadd.f32 %v1359, %v1579
      %v1602 = vadd.f32 %v1360, %v1584
      %v1603 = vadd.f32 %v1361, %v1587
      %v1604 = vadd.f32 %v1362, %v1592
      %v1605 = vadd.f32 %v1363, %v1595
      %v1606 = vld [vmem:[%s481] sm:$0xf]
      %v1607 = vld [vmem:[%s481 + $0x4] sm:$0x1]
      %v1608 = vld [vmem:[%s481 + $0x8] sm:$0xf]
      %v1609 = vld [vmem:[%s481 + $0xc] sm:$0x1]
      %v1610 = vld [vmem:[%s481 + $0x10] sm:$0xf]
      %v1611 = vld [vmem:[%s481 + $0x14] sm:$0x1]
      %v1612 = vld [vmem:[%s481 + $0x18] sm:$0xf]
      %v1613 = vld [vmem:[%s481 + $0x1c] sm:$0x1]
      %v1614 = vld [vmem:[%s481 + $0x20] sm:$0xf]
      %v1615 = vld [vmem:[%s481 + $0x24] sm:$0x1]
      %v1616 = vld [vmem:[%s481 + $0x28] sm:$0xf]
      %v1617 = vld [vmem:[%s481 + $0x2c] sm:$0x1]
      %v1618 = vld [vmem:[%s481 + $0x30] sm:$0xf]
      %v1619 = vld [vmem:[%s481 + $0x34] sm:$0x1]
      %v1620 = vld [vmem:[%s481 + $0x38] sm:$0xf]
      %v1621 = vld [vmem:[%s481 + $0x3c] sm:$0x1]
      %s1622 = scalar_lea.vmem %s6, 192
      %v1623 = vld [vmem:[%s1622] sm:$0xf]
      %v1624 = vld [vmem:[%s1622 + $0x4] sm:$0xf]
      %v1625 = vld [vmem:[%s1622 + $0x8] sm:$0xf]
      %v1626 = vld [vmem:[%s1622 + $0xc] sm:$0xf]
      %v1627 = vld [vmem:[%s1622 + $0x10] sm:$0xf]
      %v1628 = vld [vmem:[%s1622 + $0x14] sm:$0xf]
      %v1629 = vld [vmem:[%s1622 + $0x18] sm:$0xf]
      %v1630 = vld [vmem:[%s1622 + $0x1c] sm:$0xf]
      %v1639 = vunpack.c.l.b16 %v1606
      %v1640 = vunpack.c.l.b16 %v1608
      %v1641 = vunpack.c.l.b16 %v1610
      %v1642 = vunpack.c.l.b16 %v1612
      %v1643 = vunpack.c.l.b16 %v1614
      %v1644 = vunpack.c.l.b16 %v1616
      %v1645 = vunpack.c.l.b16 %v1618
      %v1646 = vunpack.c.l.b16 %v1620
      %v1647 = vpack.c.b16 %v1640, %v1639
      %v1648 = vpack.c.b16 %v1642, %v1641
      %v1649 = vpack.c.b16 %v1644, %v1643
      %v1650 = vpack.c.b16 %v1646, %v1645
      %v1659 = vunpack.c.l.b16 %v1623
      %v1660 = vunpack.c.l.b16 %v1624
      %v1661 = vunpack.c.l.b16 %v1625
      %v1662 = vunpack.c.l.b16 %v1626
      %v1663 = vunpack.c.l.b16 %v1627
      %v1664 = vunpack.c.l.b16 %v1628
      %v1665 = vunpack.c.l.b16 %v1629
      %v1666 = vunpack.c.l.b16 %v1630
      %v1667 = vpack.c.b16 %v1660, %v1659
      %v1668 = vpack.c.b16 %v1662, %v1661
      %v1669 = vpack.c.b16 %v1664, %v1663
      %v1670 = vpack.c.b16 %v1666, %v1665
      %v1676 = vsel %vm620, %v1647, 0
      %v1679 = vsel %vm620, %v1648, 0
      %v1682 = vsel %vm620, %v1649, 0
      %v1685 = vsel %vm620, %v1650, 0
      %1687 = vmatprep.subr.bf16.mxu0 0
      %1688 = vmatpush1.bf16.msra.mxu0 %v1667
      %1689 = vmatprep.subr.bf16.mxu0 0
      %1690 = vmatpush1.bf16.msra.mxu0 %v1668
      %1691 = vmatprep.subr.bf16.mxu0 0
      %1692 = vmatpush1.bf16.msra.mxu0 %v1669
      %1693 = vmatprep.subr.bf16.mxu0 0
      %1694 = vmatpush1.bf16.msra.mxu0 %v1670
      %1695 = vmatprep.subr.bf16.mxu0 0
      %1696 = vmatpush1.bf16.msra.mxu0 0
      %1697 = vmatprep.subr.bf16.mxu0 0
      %1698 = vmatpush1.bf16.msra.mxu0 0
      %1699 = vmatprep.subr.bf16.mxu0 0
      %1700 = vmatpush1.bf16.msra.mxu0 0
      %1701 = vmatprep.subr.bf16.mxu0 0
      %1702 = vmatpush1.bf16.msra.mxu0 0
      %1703 = vmatprep.subr.bf16.mxu0 0
      %1704 = vmatpush1.bf16.msra.mxu0 0
      %1705 = vmatprep.subr.bf16.mxu0 0
      %1706 = vmatpush1.bf16.msra.mxu0 0
      %1707 = vmatprep.subr.bf16.mxu0 0
      %1708 = vmatpush1.bf16.msra.mxu0 0
      %1709 = vmatprep.subr.bf16.mxu0 0
      %1710 = vmatpush1.bf16.msra.mxu0 0
      %1711 = vmatprep.subr.bf16.mxu0 0
      %1712 = vmatpush1.bf16.msra.mxu0 0
      %1713 = vmatprep.subr.bf16.mxu0 0
      %1714 = vmatpush1.bf16.msra.mxu0 0
      %1715 = vmatprep.subr.bf16.mxu0 0
      %1716 = vmatpush1.bf16.msra.mxu0 0
      %1717 = vmatprep.subr.bf16.mxu0 0
      %1718 = vmatpush1.bf16.msra.mxu0 0
      %1719 = vmatprep.mubr.bf16.mxu0 0
      %1720 = vmatmul.mubr.bf16.gmra.mrb[0].mxu0 %v1676
      %v1721 = vpop.f32.mrb[0].mxu0
      %v1722 = vadd.f32 0.0, %v1721
      %v1723 = vpop.f32.mrb[0].mxu0
      %v1724 = vpop.f32.mrb[0].mxu0
      %v1725 = vadd.f32 0.0, %v1724
      %v1726 = vpop.f32.mrb[0].mxu0
      %1727 = vmatprep.mubr.bf16.mxu0 0
      %1728 = vmatmul.mubr.bf16.gmra.mrb[0].mxu0 %v1679
      %v1729 = vpop.f32.mrb[0].mxu0
      %v1730 = vadd.f32 0.0, %v1729
      %v1731 = vpop.f32.mrb[0].mxu0
      %v1732 = vpop.f32.mrb[0].mxu0
      %v1733 = vadd.f32 0.0, %v1732
      %v1734 = vpop.f32.mrb[0].mxu0
      %1735 = vmatprep.mubr.bf16.mxu0 0
      %1736 = vmatmul.mubr.bf16.gmra.mrb[0].mxu0 %v1682
      %v1737 = vpop.f32.mrb[0].mxu0
      %v1738 = vadd.f32 0.0, %v1737
      %v1739 = vpop.f32.mrb[0].mxu0
      %v1740 = vpop.f32.mrb[0].mxu0
      %v1741 = vadd.f32 0.0, %v1740
      %v1742 = vpop.f32.mrb[0].mxu0
      %1743 = vmatprep.mubr.bf16.mxu0 0
      %1744 = vmatmul.mubr.bf16.gmra.mrb[0].mxu0 %v1685
      %v1745 = vpop.f32.mrb[0].mxu0
      %v1746 = vadd.f32 0.0, %v1745
      %v1747 = vpop.f32.mrb[0].mxu0
      %v1748 = vpop.f32.mrb[0].mxu0
      %v1749 = vadd.f32 0.0, %v1748
      %v1750 = vpop.f32.mrb[0].mxu0
      %1751 = vdwg.mxu0
      %v1752 = vadd.f32 %v1598, %v1722
      %v1753 = vadd.f32 %v1599, %v1725
      %v1754 = vadd.f32 %v1600, %v1730
      %v1755 = vadd.f32 %v1601, %v1733
      %v1756 = vadd.f32 %v1602, %v1738
      %v1757 = vadd.f32 %v1603, %v1741
      %v1758 = vadd.f32 %v1604, %v1746
      %v1759 = vadd.f32 %v1605, %v1749
      %v1760 = vld [vmem:[%s501] sm:$0xf]
      %v1761 = vld [vmem:[%s501 + $0x4] sm:$0xf]
      %v1762 = vld [vmem:[%s501 + $0x8] sm:$0xf]
      %v1763 = vld [vmem:[%s501 + $0xc] sm:$0xf]
      %v1764 = vld [vmem:[%s501 + $0x10] sm:$0xf]
      %v1765 = vld [vmem:[%s501 + $0x14] sm:$0xf]
      %v1766 = vld [vmem:[%s501 + $0x18] sm:$0xf]
      %v1767 = vld [vmem:[%s501 + $0x1c] sm:$0xf]
      %s1768 = scalar_lea.vmem %s6, 224
      %v1769 = vld [vmem:[%s1768] sm:$0xf]
      %v1770 = vld [vmem:[%s1768 + $0x4] sm:$0xf]
      %v1771 = vld [vmem:[%s1768 + $0x8] sm:$0xf]
      %v1772 = vld [vmem:[%s1768 + $0xc] sm:$0xf]
      %v1773 = vld [vmem:[%s1768 + $0x10] sm:$0xf]
      %v1774 = vld [vmem:[%s1768 + $0x14] sm:$0xf]
      %v1775 = vld [vmem:[%s1768 + $0x18] sm:$0xf]
      %v1776 = vld [vmem:[%s1768 + $0x1c] sm:$0xf]
      %v1785 = vunpack.c.l.b16 %v1760
      %v1786 = vunpack.c.l.b16 %v1761
      %v1787 = vunpack.c.l.b16 %v1762
      %v1788 = vunpack.c.l.b16 %v1763
      %v1789 = vunpack.c.l.b16 %v1764
      %v1790 = vunpack.c.l.b16 %v1765
      %v1791 = vunpack.c.l.b16 %v1766
      %v1792 = vunpack.c.l.b16 %v1767
      %v1793 = vpack.c.b16 %v1786, %v1785
      %v1794 = vpack.c.b16 %v1788, %v1787
      %v1795 = vpack.c.b16 %v1790, %v1789
      %v1796 = vpack.c.b16 %v1792, %v1791
      %v1805 = vunpack.c.l.b16 %v1769
      %v1806 = vunpack.c.l.b16 %v1770
      %v1807 = vunpack.c.l.b16 %v1771
      %v1808 = vunpack.c.l.b16 %v1772
      %v1809 = vunpack.c.l.b16 %v1773
      %v1810 = vunpack.c.l.b16 %v1774
      %v1811 = vunpack.c.l.b16 %v1775
      %v1812 = vunpack.c.l.b16 %v1776
      %v1813 = vpack.c.b16 %v1806, %v1805
      %v1814 = vpack.c.b16 %v1808, %v1807
      %v1815 = vpack.c.b16 %v1810, %v1809
      %v1816 = vpack.c.b16 %v1812, %v1811
      %v1822 = vsel %vm620, %v1793, 0
      %v1825 = vsel %vm620, %v1794, 0
      %v1828 = vsel %vm620, %v1795, 0
      %v1831 = vsel %vm620, %v1796, 0
      %1833 = vmatprep.subr.bf16.mxu0 0
      %1834 = vmatpush1.bf16.msra.mxu0 %v1813
      %1835 = vmatprep.subr.bf16.mxu0 0
      %1836 = vmatpush1.bf16.msra.mxu0 %v1814
      %1837 = vmatprep.subr.bf16.mxu0 0
      %1838 = vmatpush1.bf16.msra.mxu0 %v1815
      %1839 = vmatprep.subr.bf16.mxu0 0
      %1840 = vmatpush1.bf16.msra.mxu0 %v1816
      %1841 = vmatprep.subr.bf16.mxu0 0
      %1842 = vmatpush1.bf16.msra.mxu0 0
      %1843 = vmatprep.subr.bf16.mxu0 0
      %1844 = vmatpush1.bf16.msra.mxu0 0
      %1845 = vmatprep.subr.bf16.mxu0 0
      %1846 = vmatpush1.bf16.msra.mxu0 0
      %1847 = vmatprep.subr.bf16.mxu0 0
      %1848 = vmatpush1.bf16.msra.mxu0 0
      %1849 = vmatprep.subr.bf16.mxu0 0
      %1850 = vmatpush1.bf16.msra.mxu0 0
      %1851 = vmatprep.subr.bf16.mxu0 0
      %1852 = vmatpush1.bf16.msra.mxu0 0
      %1853 = vmatprep.subr.bf16.mxu0 0
      %1854 = vmatpush1.bf16.msra.mxu0 0
      %1855 = vmatprep.subr.bf16.mxu0 0
      %1856 = vmatpush1.bf16.msra.mxu0 0
      %1857 = vmatprep.subr.bf16.mxu0 0
      %1858 = vmatpush1.bf16.msra.mxu0 0
      %1859 = vmatprep.subr.bf16.mxu0 0
      %1860 = vmatpush1.bf16.msra.mxu0 0
      %1861 = vmatprep.subr.bf16.mxu0 0
      %1862 = vmatpush1.bf16.msra.mxu0 0
      %1863 = vmatprep.subr.bf16.mxu0 0
      %1864 = vmatpush1.bf16.msra.mxu0 0
      %1865 = vmatprep.mubr.bf16.mxu0 0
      %1866 = vmatmul.mubr.bf16.gmra.mrb[0].mxu0 %v1822
      %v1867 = vpop.f32.mrb[0].mxu0
      %v1868 = vadd.f32 0.0, %v1867
      %v1869 = vpop.f32.mrb[0].mxu0
      %v1870 = vpop.f32.mrb[0].mxu0
      %v1871 = vadd.f32 0.0, %v1870
      %v1872 = vpop.f32.mrb[0].mxu0
      %1873 = vmatprep.mubr.bf16.mxu0 0
      %1874 = vmatmul.mubr.bf16.gmra.mrb[0].mxu0 %v1825
      %v1875 = vpop.f32.mrb[0].mxu0
      %v1876 = vadd.f32 0.0, %v1875
      %v1877 = vpop.f32.mrb[0].mxu0
      %v1878 = vpop.f32.mrb[0].mxu0
      %v1879 = vadd.f32 0.0, %v1878
      %v1880 = vpop.f32.mrb[0].mxu0
      %1881 = vmatprep.mubr.bf16.mxu0 0
      %1882 = vmatmul.mubr.bf16.gmra.mrb[0].mxu0 %v1828
      %v1883 = vpop.f32.mrb[0].mxu0
      %v1884 = vadd.f32 0.0, %v1883
      %v1885 = vpop.f32.mrb[0].mxu0
      %v1886 = vpop.f32.mrb[0].mxu0
      %v1887 = vadd.f32 0.0, %v1886
      %v1888 = vpop.f32.mrb[0].mxu0
      %1889 = vmatprep.mubr.bf16.mxu0 0
      %1890 = vmatmul.mubr.bf16.gmra.mrb[0].mxu0 %v1831
      %v1891 = vpop.f32.mrb[0].mxu0
      %v1892 = vadd.f32 0.0, %v1891
      %v1893 = vpop.f32.mrb[0].mxu0
      %v1894 = vpop.f32.mrb[0].mxu0
      %v1895 = vadd.f32 0.0, %v1894
      %v1896 = vpop.f32.mrb[0].mxu0
      %1897 = vdwg.mxu0
      %v1898 = vadd.f32 %v1752, %v1868
      %v1899 = vadd.f32 %v1753, %v1871
      %v1900 = vadd.f32 %v1754, %v1876
      %v1901 = vadd.f32 %v1755, %v1879
      %v1902 = vadd.f32 %v1756, %v1884
      %v1903 = vadd.f32 %v1757, %v1887
      %v1904 = vadd.f32 %v1758, %v1892
      %v1905 = vadd.f32 %v1759, %v1895
      %v1907 = vshrl.u32 %v1606, 16
      %v1909 = vrot.slane %v1907, 4
      %v1910 = vshll.u32 %v1606, 16
      %v1912 = vrot.slane %v1910, 5
      %v1913 = vor.u32 %v1909, %v1912
      %v1914 = vrot.slane %v1913, 4
      %v1916 = vshll.u32 %v1607, 16
      %v1918 = vrot.slane %v1916, 5
      %v1919 = vsel %vm821, %v1914, %v1918
      %v1921 = vshrl.u32 %v1608, 16
      %v1923 = vrot.slane %v1921, 4
      %v1924 = vshll.u32 %v1608, 16
      %v1926 = vrot.slane %v1924, 5
      %v1927 = vor.u32 %v1923, %v1926
      %v1928 = vrot.slane %v1927, 4
      %v1930 = vshll.u32 %v1609, 16
      %v1932 = vrot.slane %v1930, 5
      %v1933 = vsel %vm821, %v1928, %v1932
      %v1935 = vshrl.u32 %v1610, 16
      %v1937 = vrot.slane %v1935, 4
      %v1938 = vshll.u32 %v1610, 16
      %v1940 = vrot.slane %v1938, 5
      %v1941 = vor.u32 %v1937, %v1940
      %v1942 = vrot.slane %v1941, 4
      %v1944 = vshll.u32 %v1611, 16
      %v1946 = vrot.slane %v1944, 5
      %v1947 = vsel %vm821, %v1942, %v1946
      %v1949 = vshrl.u32 %v1612, 16
      %v1951 = vrot.slane %v1949, 4
      %v1952 = vshll.u32 %v1612, 16
      %v1954 = vrot.slane %v1952, 5
      %v1955 = vor.u32 %v1951, %v1954
      %v1956 = vrot.slane %v1955, 4
      %v1958 = vshll.u32 %v1613, 16
      %v1960 = vrot.slane %v1958, 5
      %v1961 = vsel %vm821, %v1956, %v1960
      %v1963 = vshrl.u32 %v1614, 16
      %v1965 = vrot.slane %v1963, 4
      %v1966 = vshll.u32 %v1614, 16
      %v1968 = vrot.slane %v1966, 5
      %v1969 = vor.u32 %v1965, %v1968
      %v1970 = vrot.slane %v1969, 4
      %v1972 = vshll.u32 %v1615, 16
      %v1974 = vrot.slane %v1972, 5
      %v1975 = vsel %vm821, %v1970, %v1974
      %v1977 = vshrl.u32 %v1616, 16
      %v1979 = vrot.slane %v1977, 4
      %v1980 = vshll.u32 %v1616, 16
      %v1982 = vrot.slane %v1980, 5
      %v1983 = vor.u32 %v1979, %v1982
      %v1984 = vrot.slane %v1983, 4
      %v1986 = vshll.u32 %v1617, 16
      %v1988 = vrot.slane %v1986, 5
      %v1989 = vsel %vm821, %v1984, %v1988
      %v1991 = vshrl.u32 %v1618, 16
      %v1993 = vrot.slane %v1991, 4
      %v1994 = vshll.u32 %v1618, 16
      %v1996 = vrot.slane %v1994, 5
      %v1997 = vor.u32 %v1993, %v1996
      %v1998 = vrot.slane %v1997, 4
      %v2000 = vshll.u32 %v1619, 16
      %v2002 = vrot.slane %v2000, 5
      %v2003 = vsel %vm821, %v1998, %v2002
      %v2005 = vshrl.u32 %v1620, 16
      %v2007 = vrot.slane %v2005, 4
      %v2008 = vshll.u32 %v1620, 16
      %v2010 = vrot.slane %v2008, 5
      %v2011 = vor.u32 %v2007, %v2010
      %v2012 = vrot.slane %v2011, 4
      %v2014 = vshll.u32 %v1621, 16
      %v2016 = vrot.slane %v2014, 5
      %v2017 = vsel %vm821, %v2012, %v2016
      %s2018 = scalar_lea.vmem %s6, 256
      %v2019 = vld [vmem:[%s2018] sm:$0xf]
      %v2020 = vld [vmem:[%s2018 + $0x4] sm:$0xf]
      %v2021 = vld [vmem:[%s2018 + $0x8] sm:$0xf]
      %v2022 = vld [vmem:[%s2018 + $0xc] sm:$0xf]
      %v2023 = vld [vmem:[%s2018 + $0x10] sm:$0xf]
      %v2024 = vld [vmem:[%s2018 + $0x14] sm:$0xf]
      %v2025 = vld [vmem:[%s2018 + $0x18] sm:$0xf]
      %v2026 = vld [vmem:[%s2018 + $0x1c] sm:$0xf]
      %v2027 = vunpack.c.l.b16 %v1919
      %v2028 = vunpack.c.l.b16 %v1933
      %v2029 = vunpack.c.l.b16 %v1947
      %v2030 = vunpack.c.l.b16 %v1961
      %v2031 = vunpack.c.l.b16 %v1975
      %v2032 = vunpack.c.l.b16 %v1989
      %v2033 = vunpack.c.l.b16 %v2003
      %v2034 = vunpack.c.l.b16 %v2017
      %v2035 = vpack.c.b16 %v2028, %v2027
      %v2036 = vpack.c.b16 %v2030, %v2029
      %v2037 = vpack.c.b16 %v2032, %v2031
      %v2038 = vpack.c.b16 %v2034, %v2033
      %v2047 = vunpack.c.l.b16 %v2019
      %v2048 = vunpack.c.l.b16 %v2020
      %v2049 = vunpack.c.l.b16 %v2021
      %v2050 = vunpack.c.l.b16 %v2022
      %v2051 = vunpack.c.l.b16 %v2023
      %v2052 = vunpack.c.l.b16 %v2024
      %v2053 = vunpack.c.l.b16 %v2025
      %v2054 = vunpack.c.l.b16 %v2026
      %v2055 = vpack.c.b16 %v2048, %v2047
      %v2056 = vpack.c.b16 %v2050, %v2049
      %v2057 = vpack.c.b16 %v2052, %v2051
      %v2058 = vpack.c.b16 %v2054, %v2053
      %v2064 = vsel %vm620, %v2035, 0
      %v2067 = vsel %vm620, %v2036, 0
      %v2070 = vsel %vm620, %v2037, 0
      %v2073 = vsel %vm620, %v2038, 0
      %2075 = vmatprep.subr.bf16.mxu0 0
      %2076 = vmatpush1.bf16.msra.mxu0 %v2055
      %2077 = vmatprep.subr.bf16.mxu0 0
      %2078 = vmatpush1.bf16.msra.mxu0 %v2056
      %2079 = vmatprep.subr.bf16.mxu0 0
      %2080 = vmatpush1.bf16.msra.mxu0 %v2057
      %2081 = vmatprep.subr.bf16.mxu0 0
      %2082 = vmatpush1.bf16.msra.mxu0 %v2058
      %2083 = vmatprep.subr.bf16.mxu0 0
      %2084 = vmatpush1.bf16.msra.mxu0 0
      %2085 = vmatprep.subr.bf16.mxu0 0
      %2086 = vmatpush1.bf16.msra.mxu0 0
      %2087 = vmatprep.subr.bf16.mxu0 0
      %2088 = vmatpush1.bf16.msra.mxu0 0
      %2089 = vmatprep.subr.bf16.mxu0 0
      %2090 = vmatpush1.bf16.msra.mxu0 0
      %2091 = vmatprep.subr.bf16.mxu0 0
      %2092 = vmatpush1.bf16.msra.mxu0 0
      %2093 = vmatprep.subr.bf16.mxu0 0
      %2094 = vmatpush1.bf16.msra.mxu0 0
      %2095 = vmatprep.subr.bf16.mxu0 0
      %2096 = vmatpush1.bf16.msra.mxu0 0
      %2097 = vmatprep.subr.bf16.mxu0 0
      %2098 = vmatpush1.bf16.msra.mxu0 0
      %2099 = vmatprep.subr.bf16.mxu0 0
      %2100 = vmatpush1.bf16.msra.mxu0 0
      %2101 = vmatprep.subr.bf16.mxu0 0
      %2102 = vmatpush1.bf16.msra.mxu0 0
      %2103 = vmatprep.subr.bf16.mxu0 0
      %2104 = vmatpush1.bf16.msra.mxu0 0
      %2105 = vmatprep.subr.bf16.mxu0 0
      %2106 = vmatpush1.bf16.msra.mxu0 0
      %2107 = vmatprep.mubr.bf16.mxu0 0
      %2108 = vmatmul.mubr.bf16.gmra.mrb[0].mxu0 %v2064
      %v2109 = vpop.f32.mrb[0].mxu0
      %v2110 = vadd.f32 0.0, %v2109
      %v2111 = vpop.f32.mrb[0].mxu0
      %v2112 = vpop.f32.mrb[0].mxu0
      %v2113 = vadd.f32 0.0, %v2112
      %v2114 = vpop.f32.mrb[0].mxu0
      %2115 = vmatprep.mubr.bf16.mxu0 0
      %2116 = vmatmul.mubr.bf16.gmra.mrb[0].mxu0 %v2067
      %v2117 = vpop.f32.mrb[0].mxu0
      %v2118 = vadd.f32 0.0, %v2117
      %v2119 = vpop.f32.mrb[0].mxu0
      %v2120 = vpop.f32.mrb[0].mxu0
      %v2121 = vadd.f32 0.0, %v2120
      %v2122 = vpop.f32.mrb[0].mxu0
      %2123 = vmatprep.mubr.bf16.mxu0 0
      %2124 = vmatmul.mubr.bf16.gmra.mrb[0].mxu0 %v2070
      %v2125 = vpop.f32.mrb[0].mxu0
      %v2126 = vadd.f32 0.0, %v2125
      %v2127 = vpop.f32.mrb[0].mxu0
      %v2128 = vpop.f32.mrb[0].mxu0
      %v2129 = vadd.f32 0.0, %v2128
      %v2130 = vpop.f32.mrb[0].mxu0
      %2131 = vmatprep.mubr.bf16.mxu0 0
      %2132 = vmatmul.mubr.bf16.gmra.mrb[0].mxu0 %v2073
      %v2133 = vpop.f32.mrb[0].mxu0
      %v2134 = vadd.f32 0.0, %v2133
      %v2135 = vpop.f32.mrb[0].mxu0
      %v2136 = vpop.f32.mrb[0].mxu0
      %v2137 = vadd.f32 0.0, %v2136
      %v2138 = vpop.f32.mrb[0].mxu0
      %2139 = vdwg.mxu0
      %v2140 = vadd.f32 %v1898, %v2110
      %v2141 = vadd.f32 %v1899, %v2113
      %v2142 = vadd.f32 %v1900, %v2118
      %v2143 = vadd.f32 %v1901, %v2121
      %v2144 = vadd.f32 %v1902, %v2126
      %v2145 = vadd.f32 %v1903, %v2129
      %v2146 = vadd.f32 %v1904, %v2134
      %v2147 = vadd.f32 %v1905, %v2137
      %v2148 = vld [vmem:[%s7] sm:$0x1]
      %v2150 = vlaneseq
      %v2151 = vshrl.u32 %v2150, 7
      %v2152 = vsub.s32 0, %v2151
      %v2153 = vrot.slane %v2148, %v2152
      %v2155 = vadd.f32 %v2140, %v2153
      %v2156 = vadd.f32 %v2141, %v2153
      %v2157 = vadd.f32 %v2142, %v2153
      %v2158 = vadd.f32 %v2143, %v2153
      %v2159 = vadd.f32 %v2144, %v2153
      %v2160 = vadd.f32 %v2145, %v2153
      %v2161 = vadd.f32 %v2146, %v2153
      %v2162 = vadd.f32 %v2147, %v2153
      %2163 = vst [vmem:[%s532] sm:$0xff] %v2155
      %2164 = vst [vmem:[%s532 + $0x8] sm:$0xff] %v2156
      %2165 = vst [vmem:[%s532 + $0x10] sm:$0xff] %v2157
      %2166 = vst [vmem:[%s532 + $0x18] sm:$0xff] %v2158
      %2167 = vst [vmem:[%s532 + $0x20] sm:$0xff] %v2159
      %2168 = vst [vmem:[%s532 + $0x28] sm:$0xff] %v2160
      %2169 = vst [vmem:[%s532 + $0x30] sm:$0xff] %v2161
      %2170 = vst [vmem:[%s532 + $0x38] sm:$0xff] %v2162
      %s2171 = smul.u32 8, %s24
      %p2172 = scmp.lt.s32.totalorder %s23, 1
      %s2173 = scalar_select %p2172, %s23, 1
      %p2174 = scmp.lt.s32.totalorder %s2171, 7
      %s2175 = scalar_select %p2174, %s2171, 7
      %s2176 = smul.addr %s2173, 8
      %s2177 = sadd.s32 %s2175, %s2176
      %s2178 = smul.addr %s2177, 8
      %s2179 = scalar_lea.vmem %s8, %s2178
      // Predicated region
      $region53: #{downsample.1} parent=51 // pred_check
        %p2180 = pneg %p261
      $region54: #{downsample.1} parent=51 // pred_check_branch
        %2182 = sbr.rel (%p2180) target = $region56
      $region55: #{downsample.1} parent=51 // pred_region
        %s2183 = smul.u32 8, %s24
      $region56: #{downsample.1} parent=51 // pred_fallthru
        _
    $region52: #{downsample.1} parent=5 // pred_fallthru
      _
    %p2184 = scmp.le.s32.totalorder 2, %s14
    // Predicated region
    $region57: #{downsample.1} parent=5 // pred_check
      %p2185 = pneg %p2184
    $region58: #{downsample.1} parent=5 // pred_check_branch
      %2187 = sbr.rel (%p2185) target = $region60
    $region59: #{downsample.1} parent=5 // pred_region
      %s2188 = ssub.s32 %s14, 2
      // Predicated region
      $region61: #{downsample.1} parent=59 // pred_check
        %p2189 = pneg %p267
      $region62: #{downsample.1} parent=59 // pred_check_branch
        %2191 = sbr.rel (%p2189) target = $region64
      $region63: #{downsample.1} parent=59 // pred_region
        %s2192 = smul.u32 8, %s26
        %p2193 = scmp.lt.s32.totalorder %s25, 1
        %s2194 = scalar_select %p2193, %s25, 1
        %p2195 = scmp.lt.s32.totalorder %s2192, 7
        %s2196 = scalar_select %p2195, %s2192, 7
        %s2197 = smul.addr %s2194, 8
        %s2198 = sadd.s32 %s2196, %s2197
        %s2199 = smul.addr %s2198, 8
        %s2200 = scalar_lea.vmem %s8, %s2199
      $region64: #{downsample.1} parent=59 // pred_fallthru
        _
    $region60: #{downsample.1} parent=5 // pred_fallthru
      _
  $region6: #{downsample.1} parent=0 // loop_footer
    %s18 = sadd.s32 1, %s14
  $region7: #{downsample.1} parent=0 // loop_footer_branch
    %13 = sbr.rel target = $region3
  $region8: #{downsample.1} parent=0 // loop_exit
    _

</llo_original>
